<compile_context>
chip_gen: v5e
topology: v5e:2x2
jax: 0.10.0
libtpu: 0.0.40
codegen_flags: <defaults>
</compile_context>

<pallas_src>
import functools

import jax
import jax.numpy as jnp
from jax import lax
from jax.experimental import pallas as pl
from jax.experimental.pallas import tpu as pltpu


MATMUL_DTYPE = jnp.bfloat16   # MXU operand dtype; accumulation stays float32


def _pick_batch_block(n):
    """Largest Nb dividing n that keeps >= 2 grid steps (v7x has 2 TensorCores)."""
    for nb in range(max(1, n // 2), 0, -1):
        if n % nb == 0:
            return nb
    return 1


# ------------------------------ Pallas kernel --------------------------------

def _basic_block_kernel(x_ref, s1_ref, b1_ref, w1_ref, s2_ref, b2_ref, w2_ref,
                        *rest, kh1, pt1, pb1, res_mode):
    """Fully fused pre-activation BasicBlock for Nb images.

    Layout: every activation is (Nb, H, W*C) with W*C on lanes.  Each conv is kh
    banded MXU matmuls: band t multiplies the H-shifted activation rows by a
    (W*Cin, Wo*Cout) matrix that already contains the kw W-taps and the W
    zero-padding, so the matmul output is directly in the lane-dense layout.

    rest = ([wsc_ref], o_ref, ap1_scratch, ap2_scratch)
    """
    ap1_ref, ap2_ref = rest[-2], rest[-1]
    o_ref = rest[-3]
    wsc_ref = rest[0] if res_mode == "project" else None

    Nb, H1, L1 = x_ref.shape
    _, Ho, Lo = o_ref.shape
    Lm = w1_ref.shape[-1]
    f32 = jnp.float32

    xv = x_ref[...]

    # ---- BN1 (folded affine) + ReLU, f32 on the VPU (v5e has no bf16 VPU) ----
    a1 = jnp.maximum(xv * s1_ref[...] + b1_ref[...], 0.0)          # (Nb, H1, L1)

    # ---- stage the H-padded activation; zero ONLY the pad border rows -------
    # (interior fully overwritten every step; border re-zeroed each step so the
    #  kernel is correct when the parallel axis is split across TensorCores).
    if pt1 > 0:
        ap1_ref[:, 0:pt1, :] = jnp.zeros((Nb, pt1, L1), f32)
    if pb1 > 0:
        ap1_ref[:, pt1 + H1:pt1 + H1 + pb1, :] = jnp.zeros((Nb, pb1, L1), f32)
    ap1_ref[:, pt1:pt1 + H1, :] = a1

    # ---- conv1: kh1 banded matmuls, f32 accumulation in vregs ----------------
    acc1 = None
    for t in range(kh1):
        band = ap1_ref[:, t:t + Ho, :].reshape(Nb * Ho, L1)
        d = jnp.dot(band.astype(w1_ref.dtype), w1_ref[t],
                    preferred_element_type=f32)
        acc1 = d if acc1 is None else acc1 + d                      # (Nb*Ho, Lm)

    # ---- BN2 + ReLU on h (h never leaves VMEM/vregs) -------------------------
    b2v = jnp.maximum(acc1.reshape(Nb, Ho, Lm) * s2_ref[...] + b2_ref[...], 0.0)

    ap2_ref[:, 0:1, :] = jnp.zeros((Nb, 1, Lm), f32)
    ap2_ref[:, 1 + Ho:2 + Ho, :] = jnp.zeros((Nb, 1, Lm), f32)
    ap2_ref[:, 1:1 + Ho, :] = b2v

    # ---- residual folded into conv2's accumulator init -----------------------
    if res_mode == "identity":
        acc2 = xv.reshape(Nb * Ho, Lo)                              # x resident
    else:  # "project": 1x1 shortcut of relu(bn1(x)) as one banded matmul
        acc2 = jnp.dot(a1.reshape(Nb * H1, L1).astype(wsc_ref.dtype),
                       wsc_ref[...], preferred_element_type=f32)

    # ---- conv2: 3 banded matmuls ---------------------------------------------
    for t in range(3):
        band = ap2_ref[:, t:t + Ho, :].reshape(Nb * Ho, Lm)
        acc2 = acc2 + jnp.dot(band.astype(w2_ref.dtype), w2_ref[t],
                              preferred_element_type=f32)

    # ---- lane-dense output store (last dim = Wo*Cout, multiple of 128 here) --
    o_ref[...] = acc2.reshape(Nb, Ho, Lo)


# ------------------------------ pallas_call wrapper ---------------------------

def _fused_basic_block(x_flat, s1, b1, w1_bands, s2, b2, w2_bands, wsc_band,
                       *, H1, Ho, kh1, pt1, pb1, res_mode):
    N = x_flat.shape[0]
    L1 = x_flat.shape[-1]
    Lm = w1_bands.shape[-1]
    Lo = w2_bands.shape[-1]
    Nb = _pick_batch_block(N)

    inputs = [x_flat,
              s1.reshape(1, 1, L1), b1.reshape(1, 1, L1), w1_bands,
              s2.reshape(1, 1, Lm), b2.reshape(1, 1, Lm), w2_bands]
    in_specs = [
        pl.BlockSpec((Nb, H1, L1), lambda n: (n, 0, 0)),
        pl.BlockSpec((1, 1, L1), lambda n: (0, 0, 0)),
        pl.BlockSpec((1, 1, L1), lambda n: (0, 0, 0)),
        pl.BlockSpec((kh1, L1, Lm), lambda n: (0, 0, 0)),     # weights resident
        pl.BlockSpec((1, 1, Lm), lambda n: (0, 0, 0)),
        pl.BlockSpec((1, 1, Lm), lambda n: (0, 0, 0)),
        pl.BlockSpec((3, Lm, Lo), lambda n: (0, 0, 0)),
    ]
    if res_mode == "project":
        inputs.append(wsc_band)
        in_specs.append(pl.BlockSpec((L1, Lo), lambda n: (0, 0)))

    kernel = functools.partial(_basic_block_kernel, kh1=kh1, pt1=pt1, pb1=pb1,
                               res_mode=res_mode)
    out = pl.pallas_call(
        kernel,
        out_shape=jax.ShapeDtypeStruct((N, Ho, Lo), jnp.float32),
        grid=(N // Nb,),
        in_specs=in_specs,
        out_specs=pl.BlockSpec((Nb, Ho, Lo), lambda n: (n, 0, 0)),
        scratch_shapes=[pltpu.VMEM((Nb, pt1 + H1 + pb1, L1), jnp.float32),
                        pltpu.VMEM((Nb, Ho + 2, Lm), jnp.float32)],
        compiler_params=pltpu.CompilerParams(dimension_semantics=("parallel",)),
    )(*inputs)
    return out


# ------------------------ layout / weight plumbing (XLA side) -----------------

def _fold_bn(gamma, beta, mean, var, eps=1e-5):
    s = gamma * lax.rsqrt(var + eps)
    return s, beta - mean * s


def _space_to_depth2(x):
    """(N, H, W, C) -> (N, H/2, W/2, 4C); channel order (row_phase, col_phase, c)."""
    n, h, w, c = x.shape
    x = x.reshape(n, h // 2, 2, w // 2, 2, c).transpose(0, 1, 3, 2, 4, 5)
    return x.reshape(n, h // 2, w // 2, 4 * c)


def _conv3x3_s2_effective(w):
    """3x3/stride-2 HWIO weights -> equivalent 2x2-tap stride-1 weights over the
    space-to-depth phase image (channel order (row_phase, col_phase, c))."""
    cin, cout = w.shape[2], w.shape[3]
    w4 = jnp.zeros((4, 4, cin, cout), w.dtype).at[1:4, 1:4].set(w)
    w4 = w4.reshape(2, 2, 2, 2, cin, cout)        # (dr, rp, dc, cp, c, o)
    w4 = w4.transpose(0, 2, 1, 3, 4, 5)           # (dr, dc, rp, cp, c, o)
    return w4.reshape(2, 2, 4 * cin, cout)


def _conv_band_weights(w_eff, w1, pad_l, pad_r):
    """(kh, kw, Cin, Cout) stride-1 weights -> (kh, W1*Cin, Wo*Cout) band matrices.

    Band t maps a full lane-flattened activation row to a full output row; the kw
    W-taps and the left/right zero padding are folded into the band (zeros for
    out-of-range taps), so the kernel only needs kh H-shifted matmuls."""
    kh, kw, cin, cout = w_eff.shape
    wo = w1 + pad_l + pad_r - kw + 1
    wi_idx = jnp.arange(w1)[:, None]
    wo_idx = jnp.arange(wo)[None, :]
    u = wi_idx - wo_idx + pad_l                   # tap index per (wi, wo)
    valid = (u >= 0) & (u < kw)
    g = w_eff[:, jnp.clip(u, 0, kw - 1)]          # (kh, W1, Wo, Cin, Cout)
    g = jnp.where(valid[None, :, :, None, None], g, 0.0)
    g = g.transpose(0, 1, 3, 2, 4)                # (kh, W1, Cin, Wo, Cout)
    return g.reshape(kh, w1 * cin, wo * cout).astype(MATMUL_DTYPE)


def _shortcut_band_weight(ws, c1, wo, cout):
    """(sc_cin, Cout) 1x1 shortcut -> (Wo*C1, Wo*Cout) block-diagonal matrix acting
    on the lane-flattened relu(bn1(x)) (only its first sc_cin channels)."""
    sc_cin = ws.shape[0]
    ws_pad = jnp.zeros((c1, cout), ws.dtype).at[:sc_cin, :].set(ws)
    eye = jnp.eye(wo, dtype=ws.dtype)
    band = jnp.einsum("wv,co->wcvo", eye, ws_pad)  # (Wo, C1, Wo, Cout)
    return band.reshape(wo * c1, wo * cout).astype(MATMUL_DTYPE)


# --------------------------- Block / NetworkBlock -----------------------------

def basic_block_forward(x, p):
    """WideResNet pre-activation BasicBlock forward (dropRate = 0), one kernel."""
    n, H, W, cin = x.shape
    stride, equal = p["stride"], p["equal"]
    cout = p["conv1_w"].shape[-1]

    s1, b1 = _fold_bn(p["bn1_gamma"], p["bn1_beta"], p["bn1_mean"], p["bn1_var"])
    s2, b2 = _fold_bn(p["bn2_gamma"], p["bn2_beta"], p["bn2_mean"], p["bn2_var"])

    if stride == 2:
        # space-to-depth: 3x3/s2 conv -> 2x2-tap stride-1 conv at output res.
        xs = _space_to_depth2(x)
        H1, W1, C1 = H // 2, W // 2, 4 * cin
        x_flat = xs.reshape(n, H1, W1 * C1)
        s1v, b1v = jnp.tile(s1, 4), jnp.tile(b1, 4)
        w1_eff = _conv3x3_s2_effective(p["conv1_w"])
        kh1, pads1 = 2, (1, 0, 1, 0)
    else:
        H1, W1, C1 = H, W, cin
        x_flat = x.reshape(n, H1, W1 * C1)
        s1v, b1v = s1, b1
        w1_eff = p["conv1_w"]
        kh1, pads1 = 3, (1, 1, 1, 1)

    pt1, pb1, pl1, pr1 = pads1
    Ho = H1 + pt1 + pb1 - kh1 + 1
    Wo = W1 + pl1 + pr1 - kh1 + 1
    assert Ho == H1 and Wo == W1            # same-resolution reformulations only

    w1_bands = _conv_band_weights(w1_eff, W1, pl1, pr1)        # (kh1, W1*C1, Wo*Cm)
    w2_bands = _conv_band_weights(p["conv2_w"], Wo, 1, 1)      # (3, Wo*Cm, Wo*Cout)

    if equal:
        assert stride == 1 and cin == cout
        res_mode, wsc_band = "identity", None
    else:
        res_mode = "project"
        wsc_band = _shortcut_band_weight(p["short_w"], C1, Wo, cout)

    out = _fused_basic_block(
        x_flat,
        jnp.tile(s1v, W1), jnp.tile(b1v, W1), w1_bands,
        jnp.tile(s2, Wo), jnp.tile(b2, Wo), w2_bands, wsc_band,
        H1=H1, Ho=Ho, kh1=kh1, pt1=pt1, pb1=pb1, res_mode=res_mode)
    return out.reshape(n, Ho, Wo, cout)


def network_block_forward(x, layer_params):
    for p in layer_params:
        x = basic_block_forward(x, p)
    return x
# TODO(synk): get_hidden_representations() is a stateful hook-collection API, not
#             part of the forward pass; it has no Pallas equivalent and is omitted.


# ------------------------------- Param setup ----------------------------------

def _bn_params(key, c):
    k0, k1, k2, k3 = jax.random.split(key, 4)
    return dict(
        gamma=jax.random.uniform(k0, (c,), jnp.float32, 0.5, 1.5),
        beta=jax.random.normal(k1, (c,), jnp.float32) * 0.1,
        mean=jax.random.normal(k2, (c,), jnp.float32) * 0.1,
        var=jax.random.uniform(k3, (c,), jnp.float32, 0.5, 1.5),
    )


def init_basic_block(key, in_planes, out_planes, stride):
    k1, k2, k3, k4, k5 = jax.random.split(key, 5)
    bn1 = _bn_params(k1, in_planes)
    bn2 = _bn_params(k2, out_planes)
    p = {
        "equal": in_planes == out_planes,
        "stride": stride,
        "bn1_gamma": bn1["gamma"], "bn1_beta": bn1["beta"],
        "bn1_mean": bn1["mean"], "bn1_var": bn1["var"],
        "bn2_gamma": bn2["gamma"], "bn2_beta": bn2["beta"],
        "bn2_mean": bn2["mean"], "bn2_var": bn2["var"],
        "conv1_w": jax.random.normal(k3, (3, 3, in_planes, out_planes), jnp.float32)
                   * (2.0 / (9 * in_planes)) ** 0.5,
        "conv2_w": jax.random.normal(k4, (3, 3, out_planes, out_planes), jnp.float32)
                   * (2.0 / (9 * out_planes)) ** 0.5,
    }
    if not p["equal"]:
        p["short_w"] = jax.random.normal(k5, (in_planes, out_planes), jnp.float32) \
                       * (2.0 / in_planes) ** 0.5
    return p


def init_network_block(key, nb_layers, in_planes, out_planes, stride):
    keys = jax.random.split(key, nb_layers)
    return [init_basic_block(keys[i],
                             in_planes if i == 0 else out_planes,
                             out_planes,
                             stride if i == 0 else 1)
            for i in range(nb_layers)]


# ----------------------------- Pure-JAX reference -----------------------------
# Mirrors the kernel's numerics: folded BN affine in f32, bf16 matmul operands,
# f32 accumulation -- only accumulation-order differences remain.

def _ref_bn_relu(x, g, b, m, v, eps=1e-5):
    s = g * lax.rsqrt(v + eps)
    return jnp.maximum(x * s + (b - m * s), 0.0)


def _ref_conv(x, w, stride, padding):
    return lax.conv_general_dilated(
        x.astype(MATMUL_DTYPE), w.astype(MATMUL_DTYPE), (stride, stride), padding,
        dimension_numbers=("NHWC", "HWIO", "NHWC"),
        preferred_element_type=jnp.float32)


def _ref_block(x, p):
    a = _ref_bn_relu(x, p["bn1_gamma"], p["bn1_beta"], p["bn1_mean"], p["bn1_var"])
    h = _ref_conv(a, p["conv1_w"], p["stride"], [(1, 1), (1, 1)])
    b = _ref_bn_relu(h, p["bn2_gamma"], p["bn2_beta"], p["bn2_mean"], p["bn2_var"])
    c = _ref_conv(b, p["conv2_w"], 1, [(1, 1), (1, 1)])
    if p["equal"]:
        res = x
    else:
        res = _ref_conv(a, p["short_w"][None, None], p["stride"], [(0, 0), (0, 0)])
    return res + c


def ref_network_block(x, layer_params):
    for p in layer_params:
        x = _ref_block(x, p)
    return x


# ----------------------------------- main --------------------------------------

if __name__ == "__main__":
    key = jax.random.PRNGKey(0)
    k_x, k_p = jax.random.split(key)

    # NetworkBlock(nb_layers=2, in_planes=8, out_planes=16, block=BasicBlock, stride=2)
    N, Cin, H, W = 2, 8, 16, 16
    nb_layers, in_planes, out_planes, stride = 2, 8, 16, 2

    x_nchw = jax.random.normal(k_x, (N, Cin, H, W), jnp.float32)   # PyTorch layout
    params = init_network_block(k_p, nb_layers, in_planes, out_planes, stride)

    fwd = jax.jit(lambda t: jnp.transpose(
        network_block_forward(jnp.transpose(t, (0, 2, 3, 1)), params), (0, 3, 1, 2)))
    out_nchw = jax.block_until_ready(fwd(x_nchw))

    x_nhwc = jnp.transpose(x_nchw, (0, 2, 3, 1))
    ref_nchw = jnp.transpose(ref_network_block(x_nhwc, params), (0, 3, 1, 2))

    assert out_nchw.shape == (N, out_planes, H // 2, W // 2), out_nchw.shape
    max_err = float(jnp.max(jnp.abs(out_nchw - ref_nchw)))
    assert jnp.allclose(out_nchw, ref_nchw, atol=1e-2, rtol=1e-2), max_err

    print("KERNEL_OK")
</pallas_src>

<mosaic_0001>
module attributes {stable_mosaic.version = 11 : i64} {
  func.func @_basic_block_kernel(%arg0: i32, %arg1: memref<1x8x256xf32, #tpu.memory_space<vmem>>, %arg2: memref<1x1x256xf32, #tpu.memory_space<vmem>>, %arg3: memref<1x1x256xf32, #tpu.memory_space<vmem>>, %arg4: memref<2x256x128xbf16, #tpu.memory_space<vmem>>, %arg5: memref<1x1x128xf32, #tpu.memory_space<vmem>>, %arg6: memref<1x1x128xf32, #tpu.memory_space<vmem>>, %arg7: memref<3x128x128xbf16, #tpu.memory_space<vmem>>, %arg8: memref<256x128xbf16, #tpu.memory_space<vmem>>, %arg9: memref<1x8x128xf32, #tpu.memory_space<vmem>>, %arg10: memref<1x9x256xf32, #tpu.memory_space<vmem>>, %arg11: memref<1x10x128xf32, #tpu.memory_space<vmem>>) attributes {dimension_semantics = [#tpu.dimension_semantics<parallel>], iteration_bounds = array<i64: 2>, scalar_prefetch = 0 : i64, scratch_operands = 2 : i64, tpu.core_type = #tpu.core_type<tc>, window_params = [{transform_indices = @transform_0, window_bounds = array<i64: 1, 8, 256>}, {pipeline_mode = #tpu.pipeline_mode<synchronous>, transform_indices = @transform_1, window_bounds = array<i64: 1, 1, 256>}, {pipeline_mode = #tpu.pipeline_mode<synchronous>, transform_indices = @transform_2, window_bounds = array<i64: 1, 1, 256>}, {pipeline_mode = #tpu.pipeline_mode<synchronous>, transform_indices = @transform_3, window_bounds = array<i64: 2, 256, 128>}, {pipeline_mode = #tpu.pipeline_mode<synchronous>, transform_indices = @transform_4, window_bounds = array<i64: 1, 1, 128>}, {pipeline_mode = #tpu.pipeline_mode<synchronous>, transform_indices = @transform_5, window_bounds = array<i64: 1, 1, 128>}, {pipeline_mode = #tpu.pipeline_mode<synchronous>, transform_indices = @transform_6, window_bounds = array<i64: 3, 128, 128>}, {pipeline_mode = #tpu.pipeline_mode<synchronous>, transform_indices = @transform_7, window_bounds = array<i64: 256, 128>}, {transform_indices = @transform_8, window_bounds = array<i64: 1, 8, 128>}]} {
    %c0 = arith.constant 0 : index
    %c0_0 = arith.constant 0 : index
    %c0_1 = arith.constant 0 : index
    %0 = vector.load %arg1[%c0, %c0_0, %c0_1] : memref<1x8x256xf32, #tpu.memory_space<vmem>>, vector<1x8x256xf32>
    %c0_2 = arith.constant 0 : index
    %c0_3 = arith.constant 0 : index
    %c0_4 = arith.constant 0 : index
    %1 = vector.load %arg2[%c0_2, %c0_3, %c0_4] : memref<1x1x256xf32, #tpu.memory_space<vmem>>, vector<1x1x256xf32>
    %2 = vector.broadcast %1 : vector<1x1x256xf32> to vector<1x8x256xf32>
    %3 = arith.mulf %0, %2 : vector<1x8x256xf32>
    %c0_5 = arith.constant 0 : index
    %c0_6 = arith.constant 0 : index
    %c0_7 = arith.constant 0 : index
    %4 = vector.load %arg3[%c0_5, %c0_6, %c0_7] : memref<1x1x256xf32, #tpu.memory_space<vmem>>, vector<1x1x256xf32>
    %5 = vector.broadcast %4 : vector<1x1x256xf32> to vector<1x8x256xf32>
    %6 = arith.addf %3, %5 : vector<1x8x256xf32>
    %cst = arith.constant 0.000000e+00 : f32
    %7 = vector.broadcast %cst : f32 to vector<1x8x256xf32>
    %8 = arith.maximumf %6, %7 : vector<1x8x256xf32>
    %cst_8 = arith.constant 0.000000e+00 : f32
    %9 = vector.broadcast %cst_8 : f32 to vector<1x1x256xf32>
    %c0_9 = arith.constant 0 : index
    %c0_10 = arith.constant 0 : index
    %c0_11 = arith.constant 0 : index
    %10 = vector.load %arg10[%c0_9, %c0_10, %c0_11] : memref<1x9x256xf32, #tpu.memory_space<vmem>>, vector<1x1x256xf32>
    tpu.vector_store %arg10[%c0_9, %c0_10, %c0_11], %9 {strides = array<i32>} : memref<1x9x256xf32, #tpu.memory_space<vmem>>, vector<1x1x256xf32>,
    %c0_12 = arith.constant 0 : index
    %c1 = arith.constant 1 : index
    %c0_13 = arith.constant 0 : index
    %11 = vector.load %arg10[%c0_12, %c1, %c0_13] : memref<1x9x256xf32, #tpu.memory_space<vmem>>, vector<1x8x256xf32>
    tpu.vector_store %arg10[%c0_12, %c1, %c0_13], %8 {strides = array<i32>} : memref<1x9x256xf32, #tpu.memory_space<vmem>>, vector<1x8x256xf32>,
    %c0_14 = arith.constant 0 : index
    %c0_15 = arith.constant 0 : index
    %c0_16 = arith.constant 0 : index
    %12 = vector.load %arg10[%c0_14, %c0_15, %c0_16] : memref<1x9x256xf32, #tpu.memory_space<vmem>>, vector<1x8x256xf32>
    %13 = vector.shape_cast %12 : vector<1x8x256xf32> to vector<8x256xf32>
    %14 = arith.truncf %13 : vector<8x256xf32> to vector<8x256xbf16>
    %c0_17 = arith.constant 0 : index
    %c0_18 = arith.constant 0 : index
    %c0_19 = arith.constant 0 : index
    %15 = vector.load %arg4[%c0_17, %c0_18, %c0_19] : memref<2x256x128xbf16, #tpu.memory_space<vmem>>, vector<1x256x128xbf16>
    %16 = vector.shape_cast %15 : vector<1x256x128xbf16> to vector<256x128xbf16>
    %cst_20 = arith.constant dense<0.000000e+00> : vector<8x128xf32>
    %17 = tpu.matmul %14, %16, %cst_20 {dimension_numbers = #tpu.dot_dimension_numbers<[1], [0], [0], [1], [0, 0, 1, 1], [], []>} : vector<8x256xbf16>, vector<256x128xbf16>, vector<8x128xf32> -> vector<8x128xf32>
    %c0_21 = arith.constant 0 : index
    %c1_22 = arith.constant 1 : index
    %c0_23 = arith.constant 0 : index
    %18 = vector.load %arg10[%c0_21, %c1_22, %c0_23] : memref<1x9x256xf32, #tpu.memory_space<vmem>>, vector<1x8x256xf32>
    %19 = vector.shape_cast %18 : vector<1x8x256xf32> to vector<8x256xf32>
    %20 = arith.truncf %19 : vector<8x256xf32> to vector<8x256xbf16>
    %c1_24 = arith.constant 1 : index
    %c0_25 = arith.constant 0 : index
    %c0_26 = arith.constant 0 : index
    %21 = vector.load %arg4[%c1_24, %c0_25, %c0_26] : memref<2x256x128xbf16, #tpu.memory_space<vmem>>, vector<1x256x128xbf16>
    %22 = vector.shape_cast %21 : vector<1x256x128xbf16> to vector<256x128xbf16>
    %cst_27 = arith.constant dense<0.000000e+00> : vector<8x128xf32>
    %23 = tpu.matmul %20, %22, %cst_27 {dimension_numbers = #tpu.dot_dimension_numbers<[1], [0], [0], [1], [0, 0, 1, 1], [], []>} : vector<8x256xbf16>, vector<256x128xbf16>, vector<8x128xf32> -> vector<8x128xf32>
    %24 = arith.addf %17, %23 : vector<8x128xf32>
    %25 = vector.shape_cast %24 : vector<8x128xf32> to vector<1x8x128xf32>
    %c0_28 = arith.constant 0 : index
    %c0_29 = arith.constant 0 : index
    %c0_30 = arith.constant 0 : index
    %26 = vector.load %arg5[%c0_28, %c0_29, %c0_30] : memref<1x1x128xf32, #tpu.memory_space<vmem>>, vector<1x1x128xf32>
    %27 = vector.broadcast %26 : vector<1x1x128xf32> to vector<1x8x128xf32>
    %28 = arith.mulf %25, %27 : vector<1x8x128xf32>
    %c0_31 = arith.constant 0 : index
    %c0_32 = arith.constant 0 : index
    %c0_33 = arith.constant 0 : index
    %29 = vector.load %arg6[%c0_31, %c0_32, %c0_33] : memref<1x1x128xf32, #tpu.memory_space<vmem>>, vector<1x1x128xf32>
    %30 = vector.broadcast %29 : vector<1x1x128xf32> to vector<1x8x128xf32>
    %31 = arith.addf %28, %30 : vector<1x8x128xf32>
    %cst_34 = arith.constant 0.000000e+00 : f32
    %32 = vector.broadcast %cst_34 : f32 to vector<1x8x128xf32>
    %33 = arith.maximumf %31, %32 : vector<1x8x128xf32>
    %cst_35 = arith.constant 0.000000e+00 : f32
    %34 = vector.broadcast %cst_35 : f32 to vector<1x1x128xf32>
    %c0_36 = arith.constant 0 : index
    %c0_37 = arith.constant 0 : index
    %c0_38 = arith.constant 0 : index
    %35 = vector.load %arg11[%c0_36, %c0_37, %c0_38] : memref<1x10x128xf32, #tpu.memory_space<vmem>>, vector<1x1x128xf32>
    tpu.vector_store %arg11[%c0_36, %c0_37, %c0_38], %34 {strides = array<i32>} : memref<1x10x128xf32, #tpu.memory_space<vmem>>, vector<1x1x128xf32>,
    %cst_39 = arith.constant 0.000000e+00 : f32
    %36 = vector.broadcast %cst_39 : f32 to vector<1x1x128xf32>
    %c0_40 = arith.constant 0 : index
    %c9 = arith.constant 9 : index
    %c0_41 = arith.constant 0 : index
    %37 = vector.load %arg11[%c0_40, %c9, %c0_41] : memref<1x10x128xf32, #tpu.memory_space<vmem>>, vector<1x1x128xf32>
    tpu.vector_store %arg11[%c0_40, %c9, %c0_41], %36 {strides = array<i32>} : memref<1x10x128xf32, #tpu.memory_space<vmem>>, vector<1x1x128xf32>,
    %c0_42 = arith.constant 0 : index
    %c1_43 = arith.constant 1 : index
    %c0_44 = arith.constant 0 : index
    %38 = vector.load %arg11[%c0_42, %c1_43, %c0_44] : memref<1x10x128xf32, #tpu.memory_space<vmem>>, vector<1x8x128xf32>
    tpu.vector_store %arg11[%c0_42, %c1_43, %c0_44], %33 {strides = array<i32>} : memref<1x10x128xf32, #tpu.memory_space<vmem>>, vector<1x8x128xf32>,
    %39 = vector.shape_cast %8 : vector<1x8x256xf32> to vector<8x256xf32>
    %40 = arith.truncf %39 : vector<8x256xf32> to vector<8x256xbf16>
    %c0_45 = arith.constant 0 : index
    %c0_46 = arith.constant 0 : index
    %41 = vector.load %arg8[%c0_45, %c0_46] : memref<256x128xbf16, #tpu.memory_space<vmem>>, vector<256x128xbf16>
    %cst_47 = arith.constant dense<0.000000e+00> : vector<8x128xf32>
    %42 = tpu.matmul %40, %41, %cst_47 {dimension_numbers = #tpu.dot_dimension_numbers<[1], [0], [0], [1], [0, 0, 1, 1], [], []>} : vector<8x256xbf16>, vector<256x128xbf16>, vector<8x128xf32> -> vector<8x128xf32>
    %c0_48 = arith.constant 0 : index
    %c0_49 = arith.constant 0 : index
    %c0_50 = arith.constant 0 : index
    %43 = vector.load %arg11[%c0_48, %c0_49, %c0_50] : memref<1x10x128xf32, #tpu.memory_space<vmem>>, vector<1x8x128xf32>
    %44 = vector.shape_cast %43 : vector<1x8x128xf32> to vector<8x128xf32>
    %45 = arith.truncf %44 : vector<8x128xf32> to vector<8x128xbf16>
    %c0_51 = arith.constant 0 : index
    %c0_52 = arith.constant 0 : index
    %c0_53 = arith.constant 0 : index
    %46 = vector.load %arg7[%c0_51, %c0_52, %c0_53] : memref<3x128x128xbf16, #tpu.memory_space<vmem>>, vector<1x128x128xbf16>
    %47 = vector.shape_cast %46 : vector<1x128x128xbf16> to vector<128x128xbf16>
    %cst_54 = arith.constant dense<0.000000e+00> : vector<8x128xf32>
    %48 = tpu.matmul %45, %47, %cst_54 {dimension_numbers = #tpu.dot_dimension_numbers<[1], [0], [0], [1], [0, 0, 1, 1], [], []>} : vector<8x128xbf16>, vector<128x128xbf16>, vector<8x128xf32> -> vector<8x128xf32>
    %49 = arith.addf %42, %48 : vector<8x128xf32>
    %c0_55 = arith.constant 0 : index
    %c1_56 = arith.constant 1 : index
    %c0_57 = arith.constant 0 : index
    %50 = vector.load %arg11[%c0_55, %c1_56, %c0_57] : memref<1x10x128xf32, #tpu.memory_space<vmem>>, vector<1x8x128xf32>
    %51 = vector.shape_cast %50 : vector<1x8x128xf32> to vector<8x128xf32>
    %52 = arith.truncf %51 : vector<8x128xf32> to vector<8x128xbf16>
    %c1_58 = arith.constant 1 : index
    %c0_59 = arith.constant 0 : index
    %c0_60 = arith.constant 0 : index
    %53 = vector.load %arg7[%c1_58, %c0_59, %c0_60] : memref<3x128x128xbf16, #tpu.memory_space<vmem>>, vector<1x128x128xbf16>
    %54 = vector.shape_cast %53 : vector<1x128x128xbf16> to vector<128x128xbf16>
    %cst_61 = arith.constant dense<0.000000e+00> : vector<8x128xf32>
    %55 = tpu.matmul %52, %54, %cst_61 {dimension_numbers = #tpu.dot_dimension_numbers<[1], [0], [0], [1], [0, 0, 1, 1], [], []>} : vector<8x128xbf16>, vector<128x128xbf16>, vector<8x128xf32> -> vector<8x128xf32>
    %56 = arith.addf %49, %55 : vector<8x128xf32>
    %c0_62 = arith.constant 0 : index
    %c2 = arith.constant 2 : index
    %c0_63 = arith.constant 0 : index
    %57 = vector.load %arg11[%c0_62, %c2, %c0_63] : memref<1x10x128xf32, #tpu.memory_space<vmem>>, vector<1x8x128xf32>
    %58 = vector.shape_cast %57 : vector<1x8x128xf32> to vector<8x128xf32>
    %59 = arith.truncf %58 : vector<8x128xf32> to vector<8x128xbf16>
    %c2_64 = arith.constant 2 : index
    %c0_65 = arith.constant 0 : index
    %c0_66 = arith.constant 0 : index
    %60 = vector.load %arg7[%c2_64, %c0_65, %c0_66] : memref<3x128x128xbf16, #tpu.memory_space<vmem>>, vector<1x128x128xbf16>
    %61 = vector.shape_cast %60 : vector<1x128x128xbf16> to vector<128x128xbf16>
    %cst_67 = arith.constant dense<0.000000e+00> : vector<8x128xf32>
    %62 = tpu.matmul %59, %61, %cst_67 {dimension_numbers = #tpu.dot_dimension_numbers<[1], [0], [0], [1], [0, 0, 1, 1], [], []>} : vector<8x128xbf16>, vector<128x128xbf16>, vector<8x128xf32> -> vector<8x128xf32>
    %63 = arith.addf %56, %62 : vector<8x128xf32>
    %64 = vector.shape_cast %63 : vector<8x128xf32> to vector<1x8x128xf32>
    %c0_68 = arith.constant 0 : index
    %c0_69 = arith.constant 0 : index
    %c0_70 = arith.constant 0 : index
    %65 = vector.load %arg9[%c0_68, %c0_69, %c0_70] : memref<1x8x128xf32, #tpu.memory_space<vmem>>, vector<1x8x128xf32>
    tpu.vector_store %arg9[%c0_68, %c0_69, %c0_70], %64 {strides = array<i32>} : memref<1x8x128xf32, #tpu.memory_space<vmem>>, vector<1x8x128xf32>,
    return
  }
  func.func @transform_0(%arg0: i32) -> (i32, i32, i32) {
    %c0_i32 = arith.constant 0 : i32
    %c0_i32_0 = arith.constant 0 : i32
    %c0_i32_1 = arith.constant 0 : i32
    return %arg0, %c0_i32, %c0_i32_0 : i32, i32, i32
  }
  func.func @transform_1(%arg0: i32) -> (i32, i32, i32) {
    %c0_i32 = arith.constant 0 : i32
    %c0_i32_0 = arith.constant 0 : i32
    %c0_i32_1 = arith.constant 0 : i32
    %c0_i32_2 = arith.constant 0 : i32
    return %c0_i32, %c0_i32_0, %c0_i32_1 : i32, i32, i32
  }
  func.func @transform_2(%arg0: i32) -> (i32, i32, i32) {
    %c0_i32 = arith.constant 0 : i32
    %c0_i32_0 = arith.constant 0 : i32
    %c0_i32_1 = arith.constant 0 : i32
    %c0_i32_2 = arith.constant 0 : i32
    return %c0_i32, %c0_i32_0, %c0_i32_1 : i32, i32, i32
  }
  func.func @transform_3(%arg0: i32) -> (i32, i32, i32) {
    %c0_i32 = arith.constant 0 : i32
    %c0_i32_0 = arith.constant 0 : i32
    %c0_i32_1 = arith.constant 0 : i32
    %c0_i32_2 = arith.constant 0 : i32
    return %c0_i32, %c0_i32_0, %c0_i32_1 : i32, i32, i32
  }
  func.func @transform_4(%arg0: i32) -> (i32, i32, i32) {
    %c0_i32 = arith.constant 0 : i32
    %c0_i32_0 = arith.constant 0 : i32
    %c0_i32_1 = arith.constant 0 : i32
    %c0_i32_2 = arith.constant 0 : i32
    return %c0_i32, %c0_i32_0, %c0_i32_1 : i32, i32, i32
  }
  func.func @transform_5(%arg0: i32) -> (i32, i32, i32) {
    %c0_i32 = arith.constant 0 : i32
    %c0_i32_0 = arith.constant 0 : i32
    %c0_i32_1 = arith.constant 0 : i32
    %c0_i32_2 = arith.constant 0 : i32
    return %c0_i32, %c0_i32_0, %c0_i32_1 : i32, i32, i32
  }
  func.func @transform_6(%arg0: i32) -> (i32, i32, i32) {
    %c0_i32 = arith.constant 0 : i32
    %c0_i32_0 = arith.constant 0 : i32
    %c0_i32_1 = arith.constant 0 : i32
    %c0_i32_2 = arith.constant 0 : i32
    return %c0_i32, %c0_i32_0, %c0_i32_1 : i32, i32, i32
  }
  func.func @transform_7(%arg0: i32) -> (i32, i32) {
    %c0_i32 = arith.constant 0 : i32
    %c0_i32_0 = arith.constant 0 : i32
    %c0_i32_1 = arith.constant 0 : i32
    return %c0_i32, %c0_i32_0 : i32, i32
  }
  func.func @transform_8(%arg0: i32) -> (i32, i32, i32) {
    %c0_i32 = arith.constant 0 : i32
    %c0_i32_0 = arith.constant 0 : i32
    %c0_i32_1 = arith.constant 0 : i32
    return %arg0, %c0_i32, %c0_i32_0 : i32, i32, i32
  }
}

module attributes {stable_mosaic.version = 11 : i64} {
  func.func @_basic_block_kernel(%arg0: i32, %arg1: memref<1x8x128xf32, #tpu.memory_space<vmem>>, %arg2: memref<1x1x128xf32, #tpu.memory_space<vmem>>, %arg3: memref<1x1x128xf32, #tpu.memory_space<vmem>>, %arg4: memref<3x128x128xbf16, #tpu.memory_space<vmem>>, %arg5: memref<1x1x128xf32, #tpu.memory_space<vmem>>, %arg6: memref<1x1x128xf32, #tpu.memory_space<vmem>>, %arg7: memref<3x128x128xbf16, #tpu.memory_space<vmem>>, %arg8: memref<1x8x128xf32, #tpu.memory_space<vmem>>, %arg9: memref<1x10x128xf32, #tpu.memory_space<vmem>>, %arg10: memref<1x10x128xf32, #tpu.memory_space<vmem>>) attributes {dimension_semantics = [#tpu.dimension_semantics<parallel>], iteration_bounds = array<i64: 2>, scalar_prefetch = 0 : i64, scratch_operands = 2 : i64, tpu.core_type = #tpu.core_type<tc>, window_params = [{transform_indices = @transform_0, window_bounds = array<i64: 1, 8, 128>}, {pipeline_mode = #tpu.pipeline_mode<synchronous>, transform_indices = @transform_1, window_bounds = array<i64: 1, 1, 128>}, {pipeline_mode = #tpu.pipeline_mode<synchronous>, transform_indices = @transform_2, window_bounds = array<i64: 1, 1, 128>}, {pipeline_mode = #tpu.pipeline_mode<synchronous>, transform_indices = @transform_3, window_bounds = array<i64: 3, 128, 128>}, {pipeline_mode = #tpu.pipeline_mode<synchronous>, transform_indices = @transform_4, window_bounds = array<i64: 1, 1, 128>}, {pipeline_mode = #tpu.pipeline_mode<synchronous>, transform_indices = @transform_5, window_bounds = array<i64: 1, 1, 128>}, {pipeline_mode = #tpu.pipeline_mode<synchronous>, transform_indices = @transform_6, window_bounds = array<i64: 3, 128, 128>}, {transform_indices = @transform_7, window_bounds = array<i64: 1, 8, 128>}]} {
    %c0 = arith.constant 0 : index
    %c0_0 = arith.constant 0 : index
    %c0_1 = arith.constant 0 : index
    %0 = vector.load %arg1[%c0, %c0_0, %c0_1] : memref<1x8x128xf32, #tpu.memory_space<vmem>>, vector<1x8x128xf32>
    %c0_2 = arith.constant 0 : index
    %c0_3 = arith.constant 0 : index
    %c0_4 = arith.constant 0 : index
    %1 = vector.load %arg2[%c0_2, %c0_3, %c0_4] : memref<1x1x128xf32, #tpu.memory_space<vmem>>, vector<1x1x128xf32>
    %2 = vector.broadcast %1 : vector<1x1x128xf32> to vector<1x8x128xf32>
    %3 = arith.mulf %0, %2 : vector<1x8x128xf32>
    %c0_5 = arith.constant 0 : index
    %c0_6 = arith.constant 0 : index
    %c0_7 = arith.constant 0 : index
    %4 = vector.load %arg3[%c0_5, %c0_6, %c0_7] : memref<1x1x128xf32, #tpu.memory_space<vmem>>, vector<1x1x128xf32>
    %5 = vector.broadcast %4 : vector<1x1x128xf32> to vector<1x8x128xf32>
    %6 = arith.addf %3, %5 : vector<1x8x128xf32>
    %cst = arith.constant 0.000000e+00 : f32
    %7 = vector.broadcast %cst : f32 to vector<1x8x128xf32>
    %8 = arith.maximumf %6, %7 : vector<1x8x128xf32>
    %cst_8 = arith.constant 0.000000e+00 : f32
    %9 = vector.broadcast %cst_8 : f32 to vector<1x1x128xf32>
    %c0_9 = arith.constant 0 : index
    %c0_10 = arith.constant 0 : index
    %c0_11 = arith.constant 0 : index
    %10 = vector.load %arg9[%c0_9, %c0_10, %c0_11] : memref<1x10x128xf32, #tpu.memory_space<vmem>>, vector<1x1x128xf32>
    tpu.vector_store %arg9[%c0_9, %c0_10, %c0_11], %9 {strides = array<i32>} : memref<1x10x128xf32, #tpu.memory_space<vmem>>, vector<1x1x128xf32>,
    %cst_12 = arith.constant 0.000000e+00 : f32
    %11 = vector.broadcast %cst_12 : f32 to vector<1x1x128xf32>
    %c0_13 = arith.constant 0 : index
    %c9 = arith.constant 9 : index
    %c0_14 = arith.constant 0 : index
    %12 = vector.load %arg9[%c0_13, %c9, %c0_14] : memref<1x10x128xf32, #tpu.memory_space<vmem>>, vector<1x1x128xf32>
    tpu.vector_store %arg9[%c0_13, %c9, %c0_14], %11 {strides = array<i32>} : memref<1x10x128xf32, #tpu.memory_space<vmem>>, vector<1x1x128xf32>,
    %c0_15 = arith.constant 0 : index
    %c1 = arith.constant 1 : index
    %c0_16 = arith.constant 0 : index
    %13 = vector.load %arg9[%c0_15, %c1, %c0_16] : memref<1x10x128xf32, #tpu.memory_space<vmem>>, vector<1x8x128xf32>
    tpu.vector_store %arg9[%c0_15, %c1, %c0_16], %8 {strides = array<i32>} : memref<1x10x128xf32, #tpu.memory_space<vmem>>, vector<1x8x128xf32>,
    %c0_17 = arith.constant 0 : index
    %c0_18 = arith.constant 0 : index
    %c0_19 = arith.constant 0 : index
    %14 = vector.load %arg9[%c0_17, %c0_18, %c0_19] : memref<1x10x128xf32, #tpu.memory_space<vmem>>, vector<1x8x128xf32>
    %15 = vector.shape_cast %14 : vector<1x8x128xf32> to vector<8x128xf32>
    %16 = arith.truncf %15 : vector<8x128xf32> to vector<8x128xbf16>
    %c0_20 = arith.constant 0 : index
    %c0_21 = arith.constant 0 : index
    %c0_22 = arith.constant 0 : index
    %17 = vector.load %arg4[%c0_20, %c0_21, %c0_22] : memref<3x128x128xbf16, #tpu.memory_space<vmem>>, vector<1x128x128xbf16>
    %18 = vector.shape_cast %17 : vector<1x128x128xbf16> to vector<128x128xbf16>
    %cst_23 = arith.constant dense<0.000000e+00> : vector<8x128xf32>
    %19 = tpu.matmul %16, %18, %cst_23 {dimension_numbers = #tpu.dot_dimension_numbers<[1], [0], [0], [1], [0, 0, 1, 1], [], []>} : vector<8x128xbf16>, vector<128x128xbf16>, vector<8x128xf32> -> vector<8x128xf32>
    %c0_24 = arith.constant 0 : index
    %c1_25 = arith.constant 1 : index
    %c0_26 = arith.constant 0 : index
    %20 = vector.load %arg9[%c0_24, %c1_25, %c0_26] : memref<1x10x128xf32, #tpu.memory_space<vmem>>, vector<1x8x128xf32>
    %21 = vector.shape_cast %20 : vector<1x8x128xf32> to vector<8x128xf32>
    %22 = arith.truncf %21 : vector<8x128xf32> to vector<8x128xbf16>
    %c1_27 = arith.constant 1 : index
    %c0_28 = arith.constant 0 : index
    %c0_29 = arith.constant 0 : index
    %23 = vector.load %arg4[%c1_27, %c0_28, %c0_29] : memref<3x128x128xbf16, #tpu.memory_space<vmem>>, vector<1x128x128xbf16>
    %24 = vector.shape_cast %23 : vector<1x128x128xbf16> to vector<128x128xbf16>
    %cst_30 = arith.constant dense<0.000000e+00> : vector<8x128xf32>
    %25 = tpu.matmul %22, %24, %cst_30 {dimension_numbers = #tpu.dot_dimension_numbers<[1], [0], [0], [1], [0, 0, 1, 1], [], []>} : vector<8x128xbf16>, vector<128x128xbf16>, vector<8x128xf32> -> vector<8x128xf32>
    %26 = arith.addf %19, %25 : vector<8x128xf32>
    %c0_31 = arith.constant 0 : index
    %c2 = arith.constant 2 : index
    %c0_32 = arith.constant 0 : index
    %27 = vector.load %arg9[%c0_31, %c2, %c0_32] : memref<1x10x128xf32, #tpu.memory_space<vmem>>, vector<1x8x128xf32>
    %28 = vector.shape_cast %27 : vector<1x8x128xf32> to vector<8x128xf32>
    %29 = arith.truncf %28 : vector<8x128xf32> to vector<8x128xbf16>
    %c2_33 = arith.constant 2 : index
    %c0_34 = arith.constant 0 : index
    %c0_35 = arith.constant 0 : index
    %30 = vector.load %arg4[%c2_33, %c0_34, %c0_35] : memref<3x128x128xbf16, #tpu.memory_space<vmem>>, vector<1x128x128xbf16>
    %31 = vector.shape_cast %30 : vector<1x128x128xbf16> to vector<128x128xbf16>
    %cst_36 = arith.constant dense<0.000000e+00> : vector<8x128xf32>
    %32 = tpu.matmul %29, %31, %cst_36 {dimension_numbers = #tpu.dot_dimension_numbers<[1], [0], [0], [1], [0, 0, 1, 1], [], []>} : vector<8x128xbf16>, vector<128x128xbf16>, vector<8x128xf32> -> vector<8x128xf32>
    %33 = arith.addf %26, %32 : vector<8x128xf32>
    %34 = vector.shape_cast %33 : vector<8x128xf32> to vector<1x8x128xf32>
    %c0_37 = arith.constant 0 : index
    %c0_38 = arith.constant 0 : index
    %c0_39 = arith.constant 0 : index
    %35 = vector.load %arg5[%c0_37, %c0_38, %c0_39] : memref<1x1x128xf32, #tpu.memory_space<vmem>>, vector<1x1x128xf32>
    %36 = vector.broadcast %35 : vector<1x1x128xf32> to vector<1x8x128xf32>
    %37 = arith.mulf %34, %36 : vector<1x8x128xf32>
    %c0_40 = arith.constant 0 : index
    %c0_41 = arith.constant 0 : index
    %c0_42 = arith.constant 0 : index
    %38 = vector.load %arg6[%c0_40, %c0_41, %c0_42] : memref<1x1x128xf32, #tpu.memory_space<vmem>>, vector<1x1x128xf32>
    %39 = vector.broadcast %38 : vector<1x1x128xf32> to vector<1x8x128xf32>
    %40 = arith.addf %37, %39 : vector<1x8x128xf32>
    %cst_43 = arith.constant 0.000000e+00 : f32
    %41 = vector.broadcast %cst_43 : f32 to vector<1x8x128xf32>
    %42 = arith.maximumf %40, %41 : vector<1x8x128xf32>
    %cst_44 = arith.constant 0.000000e+00 : f32
    %43 = vector.broadcast %cst_44 : f32 to vector<1x1x128xf32>
    %c0_45 = arith.constant 0 : index
    %c0_46 = arith.constant 0 : index
    %c0_47 = arith.constant 0 : index
    %44 = vector.load %arg10[%c0_45, %c0_46, %c0_47] : memref<1x10x128xf32, #tpu.memory_space<vmem>>, vector<1x1x128xf32>
    tpu.vector_store %arg10[%c0_45, %c0_46, %c0_47], %43 {strides = array<i32>} : memref<1x10x128xf32, #tpu.memory_space<vmem>>, vector<1x1x128xf32>,
    %cst_48 = arith.constant 0.000000e+00 : f32
    %45 = vector.broadcast %cst_48 : f32 to vector<1x1x128xf32>
    %c0_49 = arith.constant 0 : index
    %c9_50 = arith.constant 9 : index
    %c0_51 = arith.constant 0 : index
    %46 = vector.load %arg10[%c0_49, %c9_50, %c0_51] : memref<1x10x128xf32, #tpu.memory_space<vmem>>, vector<1x1x128xf32>
    tpu.vector_store %arg10[%c0_49, %c9_50, %c0_51], %45 {strides = array<i32>} : memref<1x10x128xf32, #tpu.memory_space<vmem>>, vector<1x1x128xf32>,
    %c0_52 = arith.constant 0 : index
    %c1_53 = arith.constant 1 : index
    %c0_54 = arith.constant 0 : index
    %47 = vector.load %arg10[%c0_52, %c1_53, %c0_54] : memref<1x10x128xf32, #tpu.memory_space<vmem>>, vector<1x8x128xf32>
    tpu.vector_store %arg10[%c0_52, %c1_53, %c0_54], %42 {strides = array<i32>} : memref<1x10x128xf32, #tpu.memory_space<vmem>>, vector<1x8x128xf32>,
    %48 = vector.shape_cast %0 : vector<1x8x128xf32> to vector<8x128xf32>
    %c0_55 = arith.constant 0 : index
    %c0_56 = arith.constant 0 : index
    %c0_57 = arith.constant 0 : index
    %49 = vector.load %arg10[%c0_55, %c0_56, %c0_57] : memref<1x10x128xf32, #tpu.memory_space<vmem>>, vector<1x8x128xf32>
    %50 = vector.shape_cast %49 : vector<1x8x128xf32> to vector<8x128xf32>
    %51 = arith.truncf %50 : vector<8x128xf32> to vector<8x128xbf16>
    %c0_58 = arith.constant 0 : index
    %c0_59 = arith.constant 0 : index
    %c0_60 = arith.constant 0 : index
    %52 = vector.load %arg7[%c0_58, %c0_59, %c0_60] : memref<3x128x128xbf16, #tpu.memory_space<vmem>>, vector<1x128x128xbf16>
    %53 = vector.shape_cast %52 : vector<1x128x128xbf16> to vector<128x128xbf16>
    %cst_61 = arith.constant dense<0.000000e+00> : vector<8x128xf32>
    %54 = tpu.matmul %51, %53, %cst_61 {dimension_numbers = #tpu.dot_dimension_numbers<[1], [0], [0], [1], [0, 0, 1, 1], [], []>} : vector<8x128xbf16>, vector<128x128xbf16>, vector<8x128xf32> -> vector<8x128xf32>
    %55 = arith.addf %48, %54 : vector<8x128xf32>
    %c0_62 = arith.constant 0 : index
    %c1_63 = arith.constant 1 : index
    %c0_64 = arith.constant 0 : index
    %56 = vector.load %arg10[%c0_62, %c1_63, %c0_64] : memref<1x10x128xf32, #tpu.memory_space<vmem>>, vector<1x8x128xf32>
    %57 = vector.shape_cast %56 : vector<1x8x128xf32> to vector<8x128xf32>
    %58 = arith.truncf %57 : vector<8x128xf32> to vector<8x128xbf16>
    %c1_65 = arith.constant 1 : index
    %c0_66 = arith.constant 0 : index
    %c0_67 = arith.constant 0 : index
    %59 = vector.load %arg7[%c1_65, %c0_66, %c0_67] : memref<3x128x128xbf16, #tpu.memory_space<vmem>>, vector<1x128x128xbf16>
    %60 = vector.shape_cast %59 : vector<1x128x128xbf16> to vector<128x128xbf16>
    %cst_68 = arith.constant dense<0.000000e+00> : vector<8x128xf32>
    %61 = tpu.matmul %58, %60, %cst_68 {dimension_numbers = #tpu.dot_dimension_numbers<[1], [0], [0], [1], [0, 0, 1, 1], [], []>} : vector<8x128xbf16>, vector<128x128xbf16>, vector<8x128xf32> -> vector<8x128xf32>
    %62 = arith.addf %55, %61 : vector<8x128xf32>
    %c0_69 = arith.constant 0 : index
    %c2_70 = arith.constant 2 : index
    %c0_71 = arith.constant 0 : index
    %63 = vector.load %arg10[%c0_69, %c2_70, %c0_71] : memref<1x10x128xf32, #tpu.memory_space<vmem>>, vector<1x8x128xf32>
    %64 = vector.shape_cast %63 : vector<1x8x128xf32> to vector<8x128xf32>
    %65 = arith.truncf %64 : vector<8x128xf32> to vector<8x128xbf16>
    %c2_72 = arith.constant 2 : index
    %c0_73 = arith.constant 0 : index
    %c0_74 = arith.constant 0 : index
    %66 = vector.load %arg7[%c2_72, %c0_73, %c0_74] : memref<3x128x128xbf16, #tpu.memory_space<vmem>>, vector<1x128x128xbf16>
    %67 = vector.shape_cast %66 : vector<1x128x128xbf16> to vector<128x128xbf16>
    %cst_75 = arith.constant dense<0.000000e+00> : vector<8x128xf32>
    %68 = tpu.matmul %65, %67, %cst_75 {dimension_numbers = #tpu.dot_dimension_numbers<[1], [0], [0], [1], [0, 0, 1, 1], [], []>} : vector<8x128xbf16>, vector<128x128xbf16>, vector<8x128xf32> -> vector<8x128xf32>
    %69 = arith.addf %62, %68 : vector<8x128xf32>
    %70 = vector.shape_cast %69 : vector<8x128xf32> to vector<1x8x128xf32>
    %c0_76 = arith.constant 0 : index
    %c0_77 = arith.constant 0 : index
    %c0_78 = arith.constant 0 : index
    %71 = vector.load %arg8[%c0_76, %c0_77, %c0_78] : memref<1x8x128xf32, #tpu.memory_space<vmem>>, vector<1x8x128xf32>
    tpu.vector_store %arg8[%c0_76, %c0_77, %c0_78], %70 {strides = array<i32>} : memref<1x8x128xf32, #tpu.memory_space<vmem>>, vector<1x8x128xf32>,
    return
  }
  func.func @transform_0(%arg0: i32) -> (i32, i32, i32) {
    %c0_i32 = arith.constant 0 : i32
    %c0_i32_0 = arith.constant 0 : i32
    %c0_i32_1 = arith.constant 0 : i32
    return %arg0, %c0_i32, %c0_i32_0 : i32, i32, i32
  }
  func.func @transform_1(%arg0: i32) -> (i32, i32, i32) {
    %c0_i32 = arith.constant 0 : i32
    %c0_i32_0 = arith.constant 0 : i32
    %c0_i32_1 = arith.constant 0 : i32
    %c0_i32_2 = arith.constant 0 : i32
    return %c0_i32, %c0_i32_0, %c0_i32_1 : i32, i32, i32
  }
  func.func @transform_2(%arg0: i32) -> (i32, i32, i32) {
    %c0_i32 = arith.constant 0 : i32
    %c0_i32_0 = arith.constant 0 : i32
    %c0_i32_1 = arith.constant 0 : i32
    %c0_i32_2 = arith.constant 0 : i32
    return %c0_i32, %c0_i32_0, %c0_i32_1 : i32, i32, i32
  }
  func.func @transform_3(%arg0: i32) -> (i32, i32, i32) {
    %c0_i32 = arith.constant 0 : i32
    %c0_i32_0 = arith.constant 0 : i32
    %c0_i32_1 = arith.constant 0 : i32
    %c0_i32_2 = arith.constant 0 : i32
    return %c0_i32, %c0_i32_0, %c0_i32_1 : i32, i32, i32
  }
  func.func @transform_4(%arg0: i32) -> (i32, i32, i32) {
    %c0_i32 = arith.constant 0 : i32
    %c0_i32_0 = arith.constant 0 : i32
    %c0_i32_1 = arith.constant 0 : i32
    %c0_i32_2 = arith.constant 0 : i32
    return %c0_i32, %c0_i32_0, %c0_i32_1 : i32, i32, i32
  }
  func.func @transform_5(%arg0: i32) -> (i32, i32, i32) {
    %c0_i32 = arith.constant 0 : i32
    %c0_i32_0 = arith.constant 0 : i32
    %c0_i32_1 = arith.constant 0 : i32
    %c0_i32_2 = arith.constant 0 : i32
    return %c0_i32, %c0_i32_0, %c0_i32_1 : i32, i32, i32
  }
  func.func @transform_6(%arg0: i32) -> (i32, i32, i32) {
    %c0_i32 = arith.constant 0 : i32
    %c0_i32_0 = arith.constant 0 : i32
    %c0_i32_1 = arith.constant 0 : i32
    %c0_i32_2 = arith.constant 0 : i32
    return %c0_i32, %c0_i32_0, %c0_i32_1 : i32, i32, i32
  }
  func.func @transform_7(%arg0: i32) -> (i32, i32, i32) {
    %c0_i32 = arith.constant 0 : i32
    %c0_i32_0 = arith.constant 0 : i32
    %c0_i32_1 = arith.constant 0 : i32
    return %arg0, %c0_i32, %c0_i32_0 : i32, i32, i32
  }
}

</mosaic_0001>

<llo_original>
// kernel: tile.42
$region0: #{tile.42}
  #allocation0 [shape = 's32[1]{0}', space=sflag, size = 0x4, scoped, tag = 'scoped memory for tile.42']
  %s0 = inlined_call_operand.vmem [shape: f32[8], index: 0, kind: input, shape index: {}]
  %s1 = inlined_call_operand.vmem [shape: f32[4,8], index: 1, kind: output, shape index: {}]
  // Predicated region
  $region2: #{tile.42} parent=0 // pred_check
    _
  $region3: #{tile.42} parent=0 // pred_check_branch
    %3 = sbr.rel (0) target = $region5
  $region4: #{tile.42} parent=0 // pred_region
    _
  $region5: #{tile.42} parent=0 // pred_fallthru
    _
  %v4 = vld [vmem:[%s0] ss:$0 sm:$0xff]
  %5 = vst [vmem:[%s1] sm:$0xf] %v4

// kernel: tile.48
$region0: #{tile.48}
  %s0 = inlined_call_operand.vmem [shape: f32[4,8], index: 0, kind: input, shape index: {}]
  %s1 = inlined_call_operand.vmem [shape: f32[32], index: 1, kind: output, shape index: {}]
  $region1: #{tile.48} parent=0
    #allocation0 [shape = 'u8[4096]{0}', space=vmem, size = 0x1000, scoped, tag = 'scoped mem for output reshape']
    #allocation1 [shape = 'u8[4096]{0}', space=vmem, size = 0x1000, scoped, tag = 'scoped mem for input reshape']
    %s3 = ssub.s32 16, 1
    %v4 = vld [vmem:[%s0] sm:%s3]
    %5 = vst [vmem:[#allocation1] sm:%s3] %v4
    %v6 = vld [vmem:[#allocation1] sm:$0x1]
    %vm7 = vcmask 64512
    %8 = vst.msk [vmem:[#allocation0] sm:$0x1] %vm7, %v6
    %s9 = scalar_lea.vmem [#allocation1], 3
    %v10 = vld [vmem:[%s9] sm:$0x1]
    %11 = vrot.lane.b32.xlu0 %v10, 24
    %v12 = vpop.permute.xlu0 %11
    %vm13 = vcmask 261312
    %14 = vst.msk [vmem:[#allocation0] sm:$0x1] %vm13, %v12
    %s15 = scalar_lea.vmem [#allocation1], 2
    %v16 = vld [vmem:[%s15] sm:$0x1]
    %17 = vrot.lane.b32.xlu0 %v16, 16
    %v18 = vpop.permute.xlu0 %17
    %vm19 = vcmask 195712
    %20 = vst.msk [vmem:[#allocation0] sm:$0x1] %vm19, %v18
    %s21 = scalar_lea.vmem [#allocation1], 1
    %v22 = vld [vmem:[%s21] sm:$0x1]
    %23 = vrot.lane.b32.xlu0 %v22, 8
    %v24 = vpop.permute.xlu0 %23
    %vm25 = vcmask 130112
    %26 = vst.msk [vmem:[#allocation0] sm:$0x1] %vm25, %v24
    %s28 = ssub.s32 2, 1
    %v29 = vld [vmem:[#allocation0] sm:%s28]
    %s31 = ssub.s32 2, 1
    %32 = vst [vmem:[%s1] sm:%s31] %v29

// kernel: tile.49
$region0: #{tile.49}
  #allocation0 [shape = 's32[1]{0}', space=sflag, size = 0x4, scoped, tag = 'scoped memory for tile.49']
  %s0 = inlined_call_operand.vmem [shape: f32[32], index: 0, kind: input, shape index: {}]
  %s1 = inlined_call_operand.vmem [shape: f32[8,32], index: 1, kind: output, shape index: {}]
  // Predicated region
  $region2: #{tile.49} parent=0 // pred_check
    _
  $region3: #{tile.49} parent=0 // pred_check_branch
    %3 = sbr.rel (0) target = $region5
  $region4: #{tile.49} parent=0 // pred_region
    _
  $region5: #{tile.49} parent=0 // pred_fallthru
    _
  %v4 = vld [vmem:[%s0] ss:$0 sm:$0xff]
  %5 = vst [vmem:[%s1] sm:$0xff] %v4

// kernel: tile.60
$region0: #{tile.60}
  %s0 = inlined_call_operand.vmem [shape: f32[8,32], index: 0, kind: input, shape index: {}]
  %s1 = inlined_call_operand.vmem [shape: f32[1,1,256], index: 1, kind: output, shape index: {}]
  $region1: #{tile.60} parent=0
    #allocation0 [shape = 'u8[8192]{0}', space=vmem, size = 0x2000, scoped, tag = 'scoped mem for output reshape']
    %s2 = smov 3
    %v3 = vld [vmem:[%s0] ss:$4 sm:%s2]
    %vm4 = vcmask 261120
    %5 = vst.msk [vmem:[#allocation0] ss:$8 sm:$0x3] %vm4, %v3
    %s6 = scalar_lea.vmem %s0, 3
    %s7 = smov 3
    %v8 = vld [vmem:[%s6] ss:$4 sm:%s7]
    %9 = vrot.lane.b32.xlu0 %v8, 96
    %v10 = vpop.permute.xlu0 %9
    %vm11 = vcmask 1048320
    %12 = vst.msk [vmem:[#allocation0] ss:$8 sm:$0x3] %vm11, %v10
    %s13 = scalar_lea.vmem %s0, 2
    %s14 = smov 3
    %v15 = vld [vmem:[%s13] ss:$4 sm:%s14]
    %16 = vrot.lane.b32.xlu0 %v15, 64
    %v17 = vpop.permute.xlu0 %16
    %vm18 = vcmask 785920
    %19 = vst.msk [vmem:[#allocation0] ss:$8 sm:$0x3] %vm18, %v17
    %s20 = scalar_lea.vmem %s0, 1
    %s21 = smov 3
    %v22 = vld [vmem:[%s20] ss:$4 sm:%s21]
    %23 = vrot.lane.b32.xlu0 %v22, 32
    %v24 = vpop.permute.xlu0 %23
    %vm25 = vcmask 523520
    %26 = vst.msk [vmem:[#allocation0] ss:$8 sm:$0x3] %vm25, %v24
    %s28 = ssub.s32 2, 1
    %v29 = vld [vmem:[#allocation0] sm:%s28]
    %s31 = ssub.s32 2, 1
    %32 = vst [vmem:[%s1] sm:%s31] %v29
    %s33 = scalar_lea.vmem [#allocation0], 8
    %v34 = vld [vmem:[%s33] sm:%s28]
    %s36 = ssub.s32 2, 1
    %s37 = scalar_lea.vmem %s1, 1
    %38 = vst [vmem:[%s37] sm:%s36] %v34

// kernel: tile.56
$region0: #{tile.56}
  #allocation0 [shape = 's32[1]{0}', space=sflag, size = 0x4, scoped, tag = 'scoped memory for tile.56']
  %s0 = inlined_call_operand.vmem [shape: f32[16], index: 0, kind: input, shape index: {}]
  %s1 = inlined_call_operand.vmem [shape: f32[8,16], index: 1, kind: output, shape index: {}]
  // Predicated region
  $region2: #{tile.56} parent=0 // pred_check
    _
  $region3: #{tile.56} parent=0 // pred_check_branch
    %3 = sbr.rel (0) target = $region5
  $region4: #{tile.56} parent=0 // pred_region
    _
  $region5: #{tile.56} parent=0 // pred_fallthru
    _
  %v4 = vld [vmem:[%s0] ss:$0 sm:$0xff]
  %5 = vst [vmem:[%s1] sm:$0xff] %v4

// kernel: tile.62
$region0: #{tile.62}
  %s0 = inlined_call_operand.vmem [shape: f32[8,16], index: 0, kind: input, shape index: {}]
  %s1 = inlined_call_operand.vmem [shape: f32[1,1,128], index: 1, kind: output, shape index: {}]
  $region1: #{tile.62} parent=0
    #allocation0 [shape = 'u8[4096]{0}', space=vmem, size = 0x1000, scoped, tag = 'scoped mem for output reshape']
    %v2 = vld [vmem:[%s0] sm:$0x1]
    %vm3 = vcmask 130048
    %4 = vst.msk [vmem:[#allocation0] sm:$0x1] %vm3, %v2
    %s5 = scalar_lea.vmem %s0, 7
    %v6 = vld [vmem:[%s5] sm:$0x1]
    %7 = vrot.lane.b32.xlu0 %v6, 112
    %v8 = vpop.permute.xlu0 %7
    %vm9 = vcmask 1048448
    %10 = vst.msk [vmem:[#allocation0] sm:$0x1] %vm9, %v8
    %s11 = scalar_lea.vmem %s0, 6
    %v12 = vld [vmem:[%s11] sm:$0x1]
    %13 = vrot.lane.b32.xlu0 %v12, 96
    %v14 = vpop.permute.xlu0 %13
    %vm15 = vcmask 917248
    %16 = vst.msk [vmem:[#allocation0] sm:$0x1] %vm15, %v14
    %s17 = scalar_lea.vmem %s0, 5
    %v18 = vld [vmem:[%s17] sm:$0x1]
    %19 = vrot.lane.b32.xlu0 %v18, 80
    %v20 = vpop.permute.xlu0 %19
    %vm21 = vcmask 786048
    %22 = vst.msk [vmem:[#allocation0] sm:$0x1] %vm21, %v20
    %s23 = scalar_lea.vmem %s0, 4
    %v24 = vld [vmem:[%s23] sm:$0x1]
    %25 = vrot.lane.b32.xlu0 %v24, 64
    %v26 = vpop.permute.xlu0 %25
    %vm27 = vcmask 654848
    %28 = vst.msk [vmem:[#allocation0] sm:$0x1] %vm27, %v26
    %s29 = scalar_lea.vmem %s0, 3
    %v30 = vld [vmem:[%s29] sm:$0x1]
    %31 = vrot.lane.b32.xlu0 %v30, 48
    %v32 = vpop.permute.xlu0 %31
    %vm33 = vcmask 523648
    %34 = vst.msk [vmem:[#allocation0] sm:$0x1] %vm33, %v32
    %s35 = scalar_lea.vmem %s0, 2
    %v36 = vld [vmem:[%s35] sm:$0x1]
    %37 = vrot.lane.b32.xlu0 %v36, 32
    %v38 = vpop.permute.xlu0 %37
    %vm39 = vcmask 392448
    %40 = vst.msk [vmem:[#allocation0] sm:$0x1] %vm39, %v38
    %s41 = scalar_lea.vmem %s0, 1
    %v42 = vld [vmem:[%s41] sm:$0x1]
    %43 = vrot.lane.b32.xlu0 %v42, 16
    %v44 = vpop.permute.xlu0 %43
    %vm45 = vcmask 261248
    %46 = vst.msk [vmem:[#allocation0] sm:$0x1] %vm45, %v44
    %s48 = ssub.s32 2, 1
    %v49 = vld [vmem:[#allocation0] sm:%s48]
    %s51 = ssub.s32 2, 1
    %52 = vst [vmem:[%s1] sm:%s51] %v49

// kernel: _lambda_.3
$region0: #{_lambda_.3}
  #allocation0 [shape = 'u32[]', space=smem, size = 0x4, offset = 0x4, fixed_abs, tag = 'smem constant byte address 0x4 - core index']
  #allocation1 [shape = 'u32[72,128]{1,0:T(1,128)}', space=vmem, size = 0x9000, scoped, tag = 'internal scratch']
  #allocation2 [shape = 'f32[1,10,128]{2,1,0:T(8,128)}', space=vmem, size = 0x2000, scoped, tag = 'scratch operand']
  #allocation3 [shape = 'f32[1,10,128]{2,1,0:T(8,128)}', space=vmem, size = 0x2000, scoped, tag = 'scratch operand']
  %s0 = inlined_call_operand.vmem [shape: f32[2,8,128], index: 0, kind: input, shape index: {}]
  %s1 = inlined_call_operand.vmem [shape: f32[1,1,128], index: 1, kind: input, shape index: {}]
  %s2 = inlined_call_operand.vmem [shape: f32[1,1,128], index: 2, kind: input, shape index: {}]
  %s3 = inlined_call_operand.vmem [shape: bf16[3,128,128], index: 3, kind: input, shape index: {}]
  %s4 = inlined_call_operand.vmem [shape: f32[1,1,128], index: 4, kind: input, shape index: {}]
  %s5 = inlined_call_operand.vmem [shape: f32[1,1,128], index: 5, kind: input, shape index: {}]
  %s6 = inlined_call_operand.vmem [shape: bf16[3,128,128], index: 6, kind: input, shape index: {}]
  %s7 = inlined_call_operand.vmem [shape: f32[2,8,128], index: 7, kind: output, shape index: {}]
  %s8 = sld [smem:[#allocation0]]
  $region61: #{_lambda_.3} parent=0
    _
  %s10 = ssub.s32 1, %s8
  %s11 = scalar_select 0, %s10, %s8
  loop: start=0, step=1, limit=4
  $region2: #{_lambda_.3} parent=0 // loop_pre_header
    _
  $region3: #{_lambda_.3} parent=0 // loop_header
    %s13 = sphi 0, %s17
    %p14 = scmp.ge.s32.totalorder %s13, 4
    %s23 = sphi 0, %s25
    %s26 = sphi 0, %s23
    %s27 = sphi 0, %s26
    %s43 = sphi 0, %s27
    %s47 = sphi 0, %s47
    %s49 = sphi 0, %s47
    %s50 = sphi 0, %s49
    %s64 = sphi 0, %s50
    %s68 = sphi 0, %s68
    %s70 = sphi 0, %s68
    %s71 = sphi 0, %s70
    %s85 = sphi 0, %s71
    %s89 = sphi 0, %s89
    %s91 = sphi 0, %s89
    %s92 = sphi 0, %s91
    %s106 = sphi 0, %s92
    %s110 = sphi 0, %s110
    %s112 = sphi 0, %s110
    %s113 = sphi 0, %s112
    %s127 = sphi 0, %s113
    %s131 = sphi 0, %s131
    %s133 = sphi 0, %s131
    %s134 = sphi 0, %s133
    %s148 = sphi 0, %s134
    %s152 = sphi 0, %s152
    %s154 = sphi 0, %s152
    %s155 = sphi 0, %s154
    %s169 = sphi 0, %s155
    %s175 = sphi 0, %s177
    %s178 = sphi 0, %s175
    %s179 = sphi 0, %s178
    %s195 = sphi 0, %s179
  $region4: #{_lambda_.3} parent=0 // loop_header_branch
    %16 = sbr.rel (%p14) target = $region8
  $region5: #{_lambda_.3} parent=0 // loop_body
    %s18 = ssub.s32 %s13, 1
    %s19 = ssub.s32 %s13, 2
    %s20 = sadd.s32 %s13, 1
    %s21 = ssub.s32 %s13, %s20
    %p22 = scmp.eq.s32.totalorder %s21, 0
    %s24 = sadd.s32 %s23, 1
    %s25 = scalar_select %p22, %s23, %s24
    %p28 = pneg %p22
    %p29 = scmp.eq.s32.totalorder %s13, 1
    %p30 = por %p28, %p29
    %p31 = scmp.ne.s32.totalorder %s23, %s26
    %p32 = scmp.eq.s32.totalorder %s13, 0
    %p33 = por %p31, %p32
    %p34 = scmp.ne.s32.totalorder %s23, %s26
    %p35 = scmp.eq.s32.totalorder %s18, 1
    %p36 = por %p34, %p35
    %p37 = scmp.ne.s32.totalorder %s26, %s27
    %p38 = scmp.eq.s32.totalorder %s18, 0
    %p39 = por %p37, %p38
    %p40 = scmp.ne.s32.totalorder %s26, %s27
    %p41 = scmp.eq.s32.totalorder %s19, 1
    %p42 = por %p40, %p41
    %p44 = scmp.ne.s32.totalorder %s27, %s43
    %p45 = scmp.eq.s32.totalorder %s19, 0
    %p46 = por %p44, %p45
    %s48 = sadd.s32 %s47, 1
    %p51 = scmp.eq.s32.totalorder %s13, 1
    %p52 = scmp.ne.s32.totalorder %s47, %s49
    %p53 = scmp.eq.s32.totalorder %s13, 0
    %p54 = por %p52, %p53
    %p55 = scmp.ne.s32.totalorder %s47, %s49
    %p56 = scmp.eq.s32.totalorder %s18, 1
    %p57 = por %p55, %p56
    %p58 = scmp.ne.s32.totalorder %s49, %s50
    %p59 = scmp.eq.s32.totalorder %s18, 0
    %p60 = por %p58, %p59
    %p61 = scmp.ne.s32.totalorder %s49, %s50
    %p62 = scmp.eq.s32.totalorder %s19, 1
    %p63 = por %p61, %p62
    %p65 = scmp.ne.s32.totalorder %s50, %s64
    %p66 = scmp.eq.s32.totalorder %s19, 0
    %p67 = por %p65, %p66
    %s69 = sadd.s32 %s68, 1
    %p72 = scmp.eq.s32.totalorder %s13, 1
    %p73 = scmp.ne.s32.totalorder %s68, %s70
    %p74 = scmp.eq.s32.totalorder %s13, 0
    %p75 = por %p73, %p74
    %p76 = scmp.ne.s32.totalorder %s68, %s70
    %p77 = scmp.eq.s32.totalorder %s18, 1
    %p78 = por %p76, %p77
    %p79 = scmp.ne.s32.totalorder %s70, %s71
    %p80 = scmp.eq.s32.totalorder %s18, 0
    %p81 = por %p79, %p80
    %p82 = scmp.ne.s32.totalorder %s70, %s71
    %p83 = scmp.eq.s32.totalorder %s19, 1
    %p84 = por %p82, %p83
    %p86 = scmp.ne.s32.totalorder %s71, %s85
    %p87 = scmp.eq.s32.totalorder %s19, 0
    %p88 = por %p86, %p87
    %s90 = sadd.s32 %s89, 1
    %p93 = scmp.eq.s32.totalorder %s13, 1
    %p94 = scmp.ne.s32.totalorder %s89, %s91
    %p95 = scmp.eq.s32.totalorder %s13, 0
    %p96 = por %p94, %p95
    %p97 = scmp.ne.s32.totalorder %s89, %s91
    %p98 = scmp.eq.s32.totalorder %s18, 1
    %p99 = por %p97, %p98
    %p100 = scmp.ne.s32.totalorder %s91, %s92
    %p101 = scmp.eq.s32.totalorder %s18, 0
    %p102 = por %p100, %p101
    %p103 = scmp.ne.s32.totalorder %s91, %s92
    %p104 = scmp.eq.s32.totalorder %s19, 1
    %p105 = por %p103, %p104
    %p107 = scmp.ne.s32.totalorder %s92, %s106
    %p108 = scmp.eq.s32.totalorder %s19, 0
    %p109 = por %p107, %p108
    %s111 = sadd.s32 %s110, 1
    %p114 = scmp.eq.s32.totalorder %s13, 1
    %p115 = scmp.ne.s32.totalorder %s110, %s112
    %p116 = scmp.eq.s32.totalorder %s13, 0
    %p117 = por %p115, %p116
    %p118 = scmp.ne.s32.totalorder %s110, %s112
    %p119 = scmp.eq.s32.totalorder %s18, 1
    %p120 = por %p118, %p119
    %p121 = scmp.ne.s32.totalorder %s112, %s113
    %p122 = scmp.eq.s32.totalorder %s18, 0
    %p123 = por %p121, %p122
    %p124 = scmp.ne.s32.totalorder %s112, %s113
    %p125 = scmp.eq.s32.totalorder %s19, 1
    %p126 = por %p124, %p125
    %p128 = scmp.ne.s32.totalorder %s113, %s127
    %p129 = scmp.eq.s32.totalorder %s19, 0
    %p130 = por %p128, %p129
    %s132 = sadd.s32 %s131, 1
    %p135 = scmp.eq.s32.totalorder %s13, 1
    %p136 = scmp.ne.s32.totalorder %s131, %s133
    %p137 = scmp.eq.s32.totalorder %s13, 0
    %p138 = por %p136, %p137
    %p139 = scmp.ne.s32.totalorder %s131, %s133
    %p140 = scmp.eq.s32.totalorder %s18, 1
    %p141 = por %p139, %p140
    %p142 = scmp.ne.s32.totalorder %s133, %s134
    %p143 = scmp.eq.s32.totalorder %s18, 0
    %p144 = por %p142, %p143
    %p145 = scmp.ne.s32.totalorder %s133, %s134
    %p146 = scmp.eq.s32.totalorder %s19, 1
    %p147 = por %p145, %p146
    %p149 = scmp.ne.s32.totalorder %s134, %s148
    %p150 = scmp.eq.s32.totalorder %s19, 0
    %p151 = por %p149, %p150
    %s153 = sadd.s32 %s152, 1
    %p156 = scmp.eq.s32.totalorder %s13, 1
    %p157 = scmp.ne.s32.totalorder %s152, %s154
    %p158 = scmp.eq.s32.totalorder %s13, 0
    %p159 = por %p157, %p158
    %p160 = scmp.ne.s32.totalorder %s152, %s154
    %p161 = scmp.eq.s32.totalorder %s18, 1
    %p162 = por %p160, %p161
    %p163 = scmp.ne.s32.totalorder %s154, %s155
    %p164 = scmp.eq.s32.totalorder %s18, 0
    %p165 = por %p163, %p164
    %p166 = scmp.ne.s32.totalorder %s154, %s155
    %p167 = scmp.eq.s32.totalorder %s19, 1
    %p168 = por %p166, %p167
    %p170 = scmp.ne.s32.totalorder %s155, %s169
    %p171 = scmp.eq.s32.totalorder %s19, 0
    %p172 = por %p170, %p171
    %s173 = ssub.s32 %s13, %s20
    %p174 = scmp.eq.s32.totalorder %s173, 0
    %s176 = sadd.s32 %s175, 1
    %s177 = scalar_select %p174, %s175, %s176
    %p180 = pneg %p174
    %p181 = scmp.eq.s32.totalorder %s13, 1
    %p182 = por %p180, %p181
    %p183 = scmp.ne.s32.totalorder %s175, %s178
    %p184 = scmp.eq.s32.totalorder %s13, 0
    %p185 = por %p183, %p184
    %p186 = scmp.ne.s32.totalorder %s175, %s178
    %p187 = scmp.eq.s32.totalorder %s18, 1
    %p188 = por %p186, %p187
    %p189 = scmp.ne.s32.totalorder %s178, %s179
    %p190 = scmp.eq.s32.totalorder %s18, 0
    %p191 = por %p189, %p190
    %p192 = scmp.ne.s32.totalorder %s178, %s179
    %p193 = scmp.eq.s32.totalorder %s19, 1
    %p194 = por %p192, %p193
    %p196 = scmp.ne.s32.totalorder %s179, %s195
    %p197 = scmp.eq.s32.totalorder %s19, 0
    %p198 = por %p196, %p197
    %p199 = scmp.le.s32.totalorder 1, %s13
    %p200 = scmp.lt.s32.totalorder %s13, 3
    %p201 = pnand %p199, %p200
    %p202 = pneg %p201
    // Predicated region
    $region9: #{_lambda_.3} parent=5 // pred_check
      _
    $region10: #{_lambda_.3} parent=5 // pred_check_branch
      %204 = sbr.rel (%p201) target = $region12
    $region11: #{_lambda_.3} parent=5 // pred_region
      %s205 = ssub.s32 %s13, 1
      // Predicated region
      $region13: #{_lambda_.3} parent=11 // pred_check
        %p206 = pneg %p60
      $region14: #{_lambda_.3} parent=11 // pred_check_branch
        %208 = sbr.rel (%p206) target = $region16
      $region15: #{_lambda_.3} parent=11 // pred_region
        _
      $region16: #{_lambda_.3} parent=11 // pred_fallthru
        _
      // Predicated region
      $region17: #{_lambda_.3} parent=11 // pred_check
        %p209 = pneg %p81
      $region18: #{_lambda_.3} parent=11 // pred_check_branch
        %211 = sbr.rel (%p209) target = $region20
      $region19: #{_lambda_.3} parent=11 // pred_region
        _
      $region20: #{_lambda_.3} parent=11 // pred_fallthru
        _
      // Predicated region
      $region21: #{_lambda_.3} parent=11 // pred_check
        %p212 = pneg %p102
      $region22: #{_lambda_.3} parent=11 // pred_check_branch
        %214 = sbr.rel (%p212) target = $region24
      $region23: #{_lambda_.3} parent=11 // pred_region
        _
      $region24: #{_lambda_.3} parent=11 // pred_fallthru
        _
      // Predicated region
      $region25: #{_lambda_.3} parent=11 // pred_check
        %p215 = pneg %p123
      $region26: #{_lambda_.3} parent=11 // pred_check_branch
        %217 = sbr.rel (%p215) target = $region28
      $region27: #{_lambda_.3} parent=11 // pred_region
        _
      $region28: #{_lambda_.3} parent=11 // pred_fallthru
        _
      // Predicated region
      $region29: #{_lambda_.3} parent=11 // pred_check
        %p218 = pneg %p144
      $region30: #{_lambda_.3} parent=11 // pred_check_branch
        %220 = sbr.rel (%p218) target = $region32
      $region31: #{_lambda_.3} parent=11 // pred_region
        _
      $region32: #{_lambda_.3} parent=11 // pred_fallthru
        _
      // Predicated region
      $region33: #{_lambda_.3} parent=11 // pred_check
        %p221 = pneg %p165
      $region34: #{_lambda_.3} parent=11 // pred_check_branch
        %223 = sbr.rel (%p221) target = $region36
      $region35: #{_lambda_.3} parent=11 // pred_region
        _
      $region36: #{_lambda_.3} parent=11 // pred_fallthru
        _
    $region12: #{_lambda_.3} parent=5 // pred_fallthru
      _
    %p224 = scmp.lt.s32.totalorder %s13, 2
    // Predicated region
    $region37: #{_lambda_.3} parent=5 // pred_check
      %p225 = pneg %p224
    $region38: #{_lambda_.3} parent=5 // pred_check_branch
      %227 = sbr.rel (%p225) target = $region40
    $region39: #{_lambda_.3} parent=5 // pred_region
      // Predicated region
      $region41: #{_lambda_.3} parent=39 // pred_check
        %p228 = pneg %p33
      $region42: #{_lambda_.3} parent=39 // pred_check_branch
        %230 = sbr.rel (%p228) target = $region44
      $region43: #{_lambda_.3} parent=39 // pred_region
        %p231 = scmp.lt.s32.totalorder %s13, 1
        %s232 = scalar_select %p231, %s13, 1
        %s233 = smul.addr %s232, 8
        %s234 = scalar_lea.vmem %s0, %s233
      $region44: #{_lambda_.3} parent=39 // pred_fallthru
        _
    $region40: #{_lambda_.3} parent=5 // pred_fallthru
      _
    %p235 = scmp.le.s32.totalorder 1, %s13
    %p236 = scmp.lt.s32.totalorder %s13, 3
    %p237 = pnand %p235, %p236
    %p238 = pneg %p237
    // Predicated region
    $region45: #{_lambda_.3} parent=5 // pred_check
      _
    $region46: #{_lambda_.3} parent=5 // pred_check_branch
      %240 = sbr.rel (%p237) target = $region48
    $region47: #{_lambda_.3} parent=5 // pred_region
      %s241 = ssub.s32 %s13, 1
      %p242 = scmp.lt.s32.totalorder %s18, 1
      %s243 = scalar_select %p242, %s18, 1
      %s244 = smul.addr %s243, 8
      %s245 = scalar_lea.vmem %s0, %s244
      %p246 = pneg %p39
      %p247 = pneg %p36
      %p248 = pneg %p60
      %p249 = pneg %p57
      %p250 = pneg %p81
      %p251 = pneg %p78
      %p252 = pneg %p102
      %p253 = pneg %p99
      %p254 = pneg %p123
      %p255 = pneg %p120
      %p256 = pneg %p144
      %p257 = pneg %p141
      %p258 = pneg %p165
      %p259 = pneg %p162
      %p260 = pneg %p191
      %p261 = pneg %p188
      %p262 = scmp.lt.s32.totalorder %s18, 1
      %s263 = scalar_select %p262, %s18, 1
      %s264 = smul.addr %s263, 8
      %s265 = scalar_lea.vmem %s7, %s264
      %p266 = scmp.lt.s32.totalorder %s18, 1
      %s267 = scalar_select %p266, %s18, 1
      %s268 = smul.addr %s267, 8
      %s269 = scalar_lea.vmem %s0, %s268
      %p270 = scmp.lt.s32.totalorder %s18, 1
      %s271 = scalar_select %p270, %s18, 1
      %s272 = smul.addr %s271, 8
      %s273 = scalar_lea.vmem %s7, %s272
      %v274 = vld [vmem:[%s269] sm:$0xff]
      %v275 = vld [vmem:[%s1] sm:$0x1]
      %v277 = vperm.slane %v275, 0
      %v279 = vmul.f32 %v274, %v277
      %v280 = vld [vmem:[%s2] sm:$0x1]
      %v282 = vperm.slane %v280, 0
      %v284 = vadd.f32 %v279, %v282
      %v285 = vmax.f32 %v284, 0.0
      %286 = vst [vmem:[#allocation2] sm:$0x1] 0.0
      %287 = vst [vmem:[#allocation2 + $0x9] sm:$0x1] 0.0
      %288 = vst [vmem:[#allocation2 + $0x1] sm:$0xff] %v285
      %v289 = vld [vmem:[#allocation2] sm:$0xff]
      %v290 = vpack.c.bf16 %v289, %v289
      %v291 = vld [vmem:[%s3] sm:$0xf]
      %v292 = vld [vmem:[%s3 + $0x4] sm:$0xf]
      %v293 = vld [vmem:[%s3 + $0x8] sm:$0xf]
      %v294 = vld [vmem:[%s3 + $0xc] sm:$0xf]
      %v295 = vld [vmem:[%s3 + $0x10] sm:$0xf]
      %v296 = vld [vmem:[%s3 + $0x14] sm:$0xf]
      %v297 = vld [vmem:[%s3 + $0x18] sm:$0xf]
      %v298 = vld [vmem:[%s3 + $0x1c] sm:$0xf]
      %v299 = vld [vmem:[%s3 + $0x20] sm:$0xf]
      %v300 = vld [vmem:[%s3 + $0x24] sm:$0xf]
      %v301 = vld [vmem:[%s3 + $0x28] sm:$0xf]
      %v302 = vld [vmem:[%s3 + $0x2c] sm:$0xf]
      %v303 = vld [vmem:[%s3 + $0x30] sm:$0xf]
      %v304 = vld [vmem:[%s3 + $0x34] sm:$0xf]
      %v305 = vld [vmem:[%s3 + $0x38] sm:$0xf]
      %v306 = vld [vmem:[%s3 + $0x3c] sm:$0xf]
      %v307 = vld [vmem:[#allocation2 + $0x1] sm:$0xff]
      %v308 = vpack.c.bf16 %v307, %v307
      %s309 = scalar_lea.vmem %s3, 64
      %v310 = vld [vmem:[%s309] sm:$0xf]
      %v311 = vld [vmem:[%s309 + $0x4] sm:$0xf]
      %v312 = vld [vmem:[%s309 + $0x8] sm:$0xf]
      %v313 = vld [vmem:[%s309 + $0xc] sm:$0xf]
      %v314 = vld [vmem:[%s309 + $0x10] sm:$0xf]
      %v315 = vld [vmem:[%s309 + $0x14] sm:$0xf]
      %v316 = vld [vmem:[%s309 + $0x18] sm:$0xf]
      %v317 = vld [vmem:[%s309 + $0x1c] sm:$0xf]
      %v318 = vld [vmem:[%s309 + $0x20] sm:$0xf]
      %v319 = vld [vmem:[%s309 + $0x24] sm:$0xf]
      %v320 = vld [vmem:[%s309 + $0x28] sm:$0xf]
      %v321 = vld [vmem:[%s309 + $0x2c] sm:$0xf]
      %v322 = vld [vmem:[%s309 + $0x30] sm:$0xf]
      %v323 = vld [vmem:[%s309 + $0x34] sm:$0xf]
      %v324 = vld [vmem:[%s309 + $0x38] sm:$0xf]
      %v325 = vld [vmem:[%s309 + $0x3c] sm:$0xf]
      %v342 = vunpack.c.l.b16 %v310
      %v343 = vunpack.c.l.b16 %v311
      %v344 = vunpack.c.l.b16 %v312
      %v345 = vunpack.c.l.b16 %v313
      %v346 = vunpack.c.l.b16 %v314
      %v347 = vunpack.c.l.b16 %v315
      %v348 = vunpack.c.l.b16 %v316
      %v349 = vunpack.c.l.b16 %v317
      %v350 = vunpack.c.l.b16 %v318
      %v351 = vunpack.c.l.b16 %v319
      %v352 = vunpack.c.l.b16 %v320
      %v353 = vunpack.c.l.b16 %v321
      %v354 = vunpack.c.l.b16 %v322
      %v355 = vunpack.c.l.b16 %v323
      %v356 = vunpack.c.l.b16 %v324
      %v357 = vunpack.c.l.b16 %v325
      %v358 = vpack.c.b16 %v343, %v342
      %v359 = vpack.c.b16 %v345, %v344
      %v360 = vpack.c.b16 %v347, %v346
      %v361 = vpack.c.b16 %v349, %v348
      %v362 = vpack.c.b16 %v351, %v350
      %v363 = vpack.c.b16 %v353, %v352
      %v364 = vpack.c.b16 %v355, %v354
      %v365 = vpack.c.b16 %v357, %v356
      %374 = vmatpush.bf16.msra.mxu0 %v365
      %375 = vmatpush.bf16.msra.mxu0 %v364
      %376 = vmatpush.bf16.msra.mxu0 %v363
      %377 = vmatpush.bf16.msra.mxu0 %v362
      %378 = vmatpush.bf16.msra.mxu0 %v361
      %379 = vmatpush.bf16.msra.mxu0 %v360
      %380 = vmatpush.bf16.msra.mxu0 %v359
      %381 = vmatpush.bf16.msra.mxu0 %v358
      %382 = vmatmul.bf16.gmra.mxu0 %v308
      %v383 = vpop.f32.mrf.mxu0
      %v384 = vadd.f32 0.0, %v383
      %v385 = vpop.f32.mrf.mxu0
      %386 = vdwg.mxu0
      %v403 = vunpack.c.l.b16 %v291
      %v404 = vunpack.c.l.b16 %v292
      %v405 = vunpack.c.l.b16 %v293
      %v406 = vunpack.c.l.b16 %v294
      %v407 = vunpack.c.l.b16 %v295
      %v408 = vunpack.c.l.b16 %v296
      %v409 = vunpack.c.l.b16 %v297
      %v410 = vunpack.c.l.b16 %v298
      %v411 = vunpack.c.l.b16 %v299
      %v412 = vunpack.c.l.b16 %v300
      %v413 = vunpack.c.l.b16 %v301
      %v414 = vunpack.c.l.b16 %v302
      %v415 = vunpack.c.l.b16 %v303
      %v416 = vunpack.c.l.b16 %v304
      %v417 = vunpack.c.l.b16 %v305
      %v418 = vunpack.c.l.b16 %v306
      %v419 = vpack.c.b16 %v404, %v403
      %v420 = vpack.c.b16 %v406, %v405
      %v421 = vpack.c.b16 %v408, %v407
      %v422 = vpack.c.b16 %v410, %v409
      %v423 = vpack.c.b16 %v412, %v411
      %v424 = vpack.c.b16 %v414, %v413
      %v425 = vpack.c.b16 %v416, %v415
      %v426 = vpack.c.b16 %v418, %v417
      %435 = vmatpush.bf16.msra.mxu0 %v426
      %436 = vmatpush.bf16.msra.mxu0 %v425
      %437 = vmatpush.bf16.msra.mxu0 %v424
      %438 = vmatpush.bf16.msra.mxu0 %v423
      %439 = vmatpush.bf16.msra.mxu0 %v422
      %440 = vmatpush.bf16.msra.mxu0 %v421
      %441 = vmatpush.bf16.msra.mxu0 %v420
      %442 = vmatpush.bf16.msra.mxu0 %v419
      %443 = vmatmul.bf16.gmra.mxu0 %v290
      %v444 = vpop.f32.mrf.mxu0
      %v445 = vadd.f32 %v384, %v444
      %v446 = vpop.f32.mrf.mxu0
      %447 = vdwg.mxu0
      %v448 = vld [vmem:[#allocation2 + $0x2] sm:$0xff]
      %v449 = vpack.c.bf16 %v448, %v448
      %s450 = scalar_lea.vmem %s3, 128
      %v451 = vld [vmem:[%s450] sm:$0xf]
      %v452 = vld [vmem:[%s450 + $0x4] sm:$0xf]
      %v453 = vld [vmem:[%s450 + $0x8] sm:$0xf]
      %v454 = vld [vmem:[%s450 + $0xc] sm:$0xf]
      %v455 = vld [vmem:[%s450 + $0x10] sm:$0xf]
      %v456 = vld [vmem:[%s450 + $0x14] sm:$0xf]
      %v457 = vld [vmem:[%s450 + $0x18] sm:$0xf]
      %v458 = vld [vmem:[%s450 + $0x1c] sm:$0xf]
      %v459 = vld [vmem:[%s450 + $0x20] sm:$0xf]
      %v460 = vld [vmem:[%s450 + $0x24] sm:$0xf]
      %v461 = vld [vmem:[%s450 + $0x28] sm:$0xf]
      %v462 = vld [vmem:[%s450 + $0x2c] sm:$0xf]
      %v463 = vld [vmem:[%s450 + $0x30] sm:$0xf]
      %v464 = vld [vmem:[%s450 + $0x34] sm:$0xf]
      %v465 = vld [vmem:[%s450 + $0x38] sm:$0xf]
      %v466 = vld [vmem:[%s450 + $0x3c] sm:$0xf]
      %v483 = vunpack.c.l.b16 %v451
      %v484 = vunpack.c.l.b16 %v452
      %v485 = vunpack.c.l.b16 %v453
      %v486 = vunpack.c.l.b16 %v454
      %v487 = vunpack.c.l.b16 %v455
      %v488 = vunpack.c.l.b16 %v456
      %v489 = vunpack.c.l.b16 %v457
      %v490 = vunpack.c.l.b16 %v458
      %v491 = vunpack.c.l.b16 %v459
      %v492 = vunpack.c.l.b16 %v460
      %v493 = vunpack.c.l.b16 %v461
      %v494 = vunpack.c.l.b16 %v462
      %v495 = vunpack.c.l.b16 %v463
      %v496 = vunpack.c.l.b16 %v464
      %v497 = vunpack.c.l.b16 %v465
      %v498 = vunpack.c.l.b16 %v466
      %v499 = vpack.c.b16 %v484, %v483
      %v500 = vpack.c.b16 %v486, %v485
      %v501 = vpack.c.b16 %v488, %v487
      %v502 = vpack.c.b16 %v490, %v489
      %v503 = vpack.c.b16 %v492, %v491
      %v504 = vpack.c.b16 %v494, %v493
      %v505 = vpack.c.b16 %v496, %v495
      %v506 = vpack.c.b16 %v498, %v497
      %515 = vmatpush.bf16.msra.mxu0 %v506
      %516 = vmatpush.bf16.msra.mxu0 %v505
      %517 = vmatpush.bf16.msra.mxu0 %v504
      %518 = vmatpush.bf16.msra.mxu0 %v503
      %519 = vmatpush.bf16.msra.mxu0 %v502
      %520 = vmatpush.bf16.msra.mxu0 %v501
      %521 = vmatpush.bf16.msra.mxu0 %v500
      %522 = vmatpush.bf16.msra.mxu0 %v499
      %523 = vmatmul.bf16.gmra.mxu0 %v449
      %v524 = vpop.f32.mrf.mxu0
      %v525 = vadd.f32 0.0, %v524
      %v526 = vpop.f32.mrf.mxu0
      %527 = vdwg.mxu0
      %v528 = vadd.f32 %v445, %v525
      %v529 = vld [vmem:[%s4] sm:$0x1]
      %v531 = vperm.slane %v529, 0
      %v533 = vmul.f32 %v528, %v531
      %v534 = vld [vmem:[%s5] sm:$0x1]
      %v536 = vperm.slane %v534, 0
      %v538 = vadd.f32 %v533, %v536
      %v539 = vmax.f32 %v538, 0.0
      %540 = vst [vmem:[#allocation3] sm:$0x1] 0.0
      %541 = vst [vmem:[#allocation3 + $0x9] sm:$0x1] 0.0
      %542 = vst [vmem:[#allocation3 + $0x1] sm:$0xff] %v539
      %v543 = vld [vmem:[#allocation3] sm:$0xff]
      %v544 = vpack.c.bf16 %v543, %v543
      %v545 = vld [vmem:[%s6] sm:$0xf]
      %v546 = vld [vmem:[%s6 + $0x4] sm:$0xf]
      %v547 = vld [vmem:[%s6 + $0x8] sm:$0xf]
      %v548 = vld [vmem:[%s6 + $0xc] sm:$0xf]
      %v549 = vld [vmem:[%s6 + $0x10] sm:$0xf]
      %v550 = vld [vmem:[%s6 + $0x14] sm:$0xf]
      %v551 = vld [vmem:[%s6 + $0x18] sm:$0xf]
      %v552 = vld [vmem:[%s6 + $0x1c] sm:$0xf]
      %v553 = vld [vmem:[%s6 + $0x20] sm:$0xf]
      %v554 = vld [vmem:[%s6 + $0x24] sm:$0xf]
      %v555 = vld [vmem:[%s6 + $0x28] sm:$0xf]
      %v556 = vld [vmem:[%s6 + $0x2c] sm:$0xf]
      %v557 = vld [vmem:[%s6 + $0x30] sm:$0xf]
      %v558 = vld [vmem:[%s6 + $0x34] sm:$0xf]
      %v559 = vld [vmem:[%s6 + $0x38] sm:$0xf]
      %v560 = vld [vmem:[%s6 + $0x3c] sm:$0xf]
      %v577 = vunpack.c.l.b16 %v545
      %v578 = vunpack.c.l.b16 %v546
      %v579 = vunpack.c.l.b16 %v547
      %v580 = vunpack.c.l.b16 %v548
      %v581 = vunpack.c.l.b16 %v549
      %v582 = vunpack.c.l.b16 %v550
      %v583 = vunpack.c.l.b16 %v551
      %v584 = vunpack.c.l.b16 %v552
      %v585 = vunpack.c.l.b16 %v553
      %v586 = vunpack.c.l.b16 %v554
      %v587 = vunpack.c.l.b16 %v555
      %v588 = vunpack.c.l.b16 %v556
      %v589 = vunpack.c.l.b16 %v557
      %v590 = vunpack.c.l.b16 %v558
      %v591 = vunpack.c.l.b16 %v559
      %v592 = vunpack.c.l.b16 %v560
      %v593 = vpack.c.b16 %v578, %v577
      %v594 = vpack.c.b16 %v580, %v579
      %v595 = vpack.c.b16 %v582, %v581
      %v596 = vpack.c.b16 %v584, %v583
      %v597 = vpack.c.b16 %v586, %v585
      %v598 = vpack.c.b16 %v588, %v587
      %v599 = vpack.c.b16 %v590, %v589
      %v600 = vpack.c.b16 %v592, %v591
      %609 = vmatpush.bf16.msra.mxu0 %v600
      %610 = vmatpush.bf16.msra.mxu0 %v599
      %611 = vmatpush.bf16.msra.mxu0 %v598
      %612 = vmatpush.bf16.msra.mxu0 %v597
      %613 = vmatpush.bf16.msra.mxu0 %v596
      %614 = vmatpush.bf16.msra.mxu0 %v595
      %615 = vmatpush.bf16.msra.mxu0 %v594
      %616 = vmatpush.bf16.msra.mxu0 %v593
      %617 = vmatmul.bf16.gmra.mxu0 %v544
      %v618 = vpop.f32.mrf.mxu0
      %v619 = vadd.f32 0.0, %v618
      %v620 = vpop.f32.mrf.mxu0
      %621 = vdwg.mxu0
      %v622 = vadd.f32 %v274, %v619
      %v623 = vld [vmem:[#allocation3 + $0x1] sm:$0xff]
      %v624 = vpack.c.bf16 %v623, %v623
      %s625 = scalar_lea.vmem %s6, 64
      %v626 = vld [vmem:[%s625] sm:$0xf]
      %v627 = vld [vmem:[%s625 + $0x4] sm:$0xf]
      %v628 = vld [vmem:[%s625 + $0x8] sm:$0xf]
      %v629 = vld [vmem:[%s625 + $0xc] sm:$0xf]
      %v630 = vld [vmem:[%s625 + $0x10] sm:$0xf]
      %v631 = vld [vmem:[%s625 + $0x14] sm:$0xf]
      %v632 = vld [vmem:[%s625 + $0x18] sm:$0xf]
      %v633 = vld [vmem:[%s625 + $0x1c] sm:$0xf]
      %v634 = vld [vmem:[%s625 + $0x20] sm:$0xf]
      %v635 = vld [vmem:[%s625 + $0x24] sm:$0xf]
      %v636 = vld [vmem:[%s625 + $0x28] sm:$0xf]
      %v637 = vld [vmem:[%s625 + $0x2c] sm:$0xf]
      %v638 = vld [vmem:[%s625 + $0x30] sm:$0xf]
      %v639 = vld [vmem:[%s625 + $0x34] sm:$0xf]
      %v640 = vld [vmem:[%s625 + $0x38] sm:$0xf]
      %v641 = vld [vmem:[%s625 + $0x3c] sm:$0xf]
      %v658 = vunpack.c.l.b16 %v626
      %v659 = vunpack.c.l.b16 %v627
      %v660 = vunpack.c.l.b16 %v628
      %v661 = vunpack.c.l.b16 %v629
      %v662 = vunpack.c.l.b16 %v630
      %v663 = vunpack.c.l.b16 %v631
      %v664 = vunpack.c.l.b16 %v632
      %v665 = vunpack.c.l.b16 %v633
      %v666 = vunpack.c.l.b16 %v634
      %v667 = vunpack.c.l.b16 %v635
      %v668 = vunpack.c.l.b16 %v636
      %v669 = vunpack.c.l.b16 %v637
      %v670 = vunpack.c.l.b16 %v638
      %v671 = vunpack.c.l.b16 %v639
      %v672 = vunpack.c.l.b16 %v640
      %v673 = vunpack.c.l.b16 %v641
      %v674 = vpack.c.b16 %v659, %v658
      %v675 = vpack.c.b16 %v661, %v660
      %v676 = vpack.c.b16 %v663, %v662
      %v677 = vpack.c.b16 %v665, %v664
      %v678 = vpack.c.b16 %v667, %v666
      %v679 = vpack.c.b16 %v669, %v668
      %v680 = vpack.c.b16 %v671, %v670
      %v681 = vpack.c.b16 %v673, %v672
      %690 = vmatpush.bf16.msra.mxu0 %v681
      %691 = vmatpush.bf16.msra.mxu0 %v680
      %692 = vmatpush.bf16.msra.mxu0 %v679
      %693 = vmatpush.bf16.msra.mxu0 %v678
      %694 = vmatpush.bf16.msra.mxu0 %v677
      %695 = vmatpush.bf16.msra.mxu0 %v676
      %696 = vmatpush.bf16.msra.mxu0 %v675
      %697 = vmatpush.bf16.msra.mxu0 %v674
      %698 = vmatmul.bf16.gmra.mxu0 %v624
      %v699 = vpop.f32.mrf.mxu0
      %v700 = vadd.f32 0.0, %v699
      %v701 = vpop.f32.mrf.mxu0
      %702 = vdwg.mxu0
      %v703 = vadd.f32 %v622, %v700
      %v704 = vld [vmem:[#allocation3 + $0x2] sm:$0xff]
      %v705 = vpack.c.bf16 %v704, %v704
      %s706 = scalar_lea.vmem %s6, 128
      %v707 = vld [vmem:[%s706] sm:$0xf]
      %v708 = vld [vmem:[%s706 + $0x4] sm:$0xf]
      %v709 = vld [vmem:[%s706 + $0x8] sm:$0xf]
      %v710 = vld [vmem:[%s706 + $0xc] sm:$0xf]
      %v711 = vld [vmem:[%s706 + $0x10] sm:$0xf]
      %v712 = vld [vmem:[%s706 + $0x14] sm:$0xf]
      %v713 = vld [vmem:[%s706 + $0x18] sm:$0xf]
      %v714 = vld [vmem:[%s706 + $0x1c] sm:$0xf]
      %v715 = vld [vmem:[%s706 + $0x20] sm:$0xf]
      %v716 = vld [vmem:[%s706 + $0x24] sm:$0xf]
      %v717 = vld [vmem:[%s706 + $0x28] sm:$0xf]
      %v718 = vld [vmem:[%s706 + $0x2c] sm:$0xf]
      %v719 = vld [vmem:[%s706 + $0x30] sm:$0xf]
      %v720 = vld [vmem:[%s706 + $0x34] sm:$0xf]
      %v721 = vld [vmem:[%s706 + $0x38] sm:$0xf]
      %v722 = vld [vmem:[%s706 + $0x3c] sm:$0xf]
      %v739 = vunpack.c.l.b16 %v707
      %v740 = vunpack.c.l.b16 %v708
      %v741 = vunpack.c.l.b16 %v709
      %v742 = vunpack.c.l.b16 %v710
      %v743 = vunpack.c.l.b16 %v711
      %v744 = vunpack.c.l.b16 %v712
      %v745 = vunpack.c.l.b16 %v713
      %v746 = vunpack.c.l.b16 %v714
      %v747 = vunpack.c.l.b16 %v715
      %v748 = vunpack.c.l.b16 %v716
      %v749 = vunpack.c.l.b16 %v717
      %v750 = vunpack.c.l.b16 %v718
      %v751 = vunpack.c.l.b16 %v719
      %v752 = vunpack.c.l.b16 %v720
      %v753 = vunpack.c.l.b16 %v721
      %v754 = vunpack.c.l.b16 %v722
      %v755 = vpack.c.b16 %v740, %v739
      %v756 = vpack.c.b16 %v742, %v741
      %v757 = vpack.c.b16 %v744, %v743
      %v758 = vpack.c.b16 %v746, %v745
      %v759 = vpack.c.b16 %v748, %v747
      %v760 = vpack.c.b16 %v750, %v749
      %v761 = vpack.c.b16 %v752, %v751
      %v762 = vpack.c.b16 %v754, %v753
      %771 = vmatpush.bf16.msra.mxu0 %v762
      %772 = vmatpush.bf16.msra.mxu0 %v761
      %773 = vmatpush.bf16.msra.mxu0 %v760
      %774 = vmatpush.bf16.msra.mxu0 %v759
      %775 = vmatpush.bf16.msra.mxu0 %v758
      %776 = vmatpush.bf16.msra.mxu0 %v757
      %777 = vmatpush.bf16.msra.mxu0 %v756
      %778 = vmatpush.bf16.msra.mxu0 %v755
      %779 = vmatmul.bf16.gmra.mxu0 %v705
      %v780 = vpop.f32.mrf.mxu0
      %v781 = vadd.f32 0.0, %v780
      %v782 = vpop.f32.mrf.mxu0
      %783 = vdwg.mxu0
      %v784 = vadd.f32 %v703, %v781
      %785 = vst [vmem:[%s273] sm:$0xff] %v784
      %p786 = scmp.lt.s32.totalorder %s18, 1
      %s787 = scalar_select %p786, %s18, 1
      %s788 = smul.addr %s787, 8
      %s789 = scalar_lea.vmem %s7, %s788
      // Predicated region
      $region49: #{_lambda_.3} parent=47 // pred_check
        %p790 = pneg %p188
      $region50: #{_lambda_.3} parent=47 // pred_check_branch
        %792 = sbr.rel (%p790) target = $region52
      $region51: #{_lambda_.3} parent=47 // pred_region
        _
      $region52: #{_lambda_.3} parent=47 // pred_fallthru
        _
    $region48: #{_lambda_.3} parent=5 // pred_fallthru
      _
    %p793 = scmp.le.s32.totalorder 2, %s13
    // Predicated region
    $region53: #{_lambda_.3} parent=5 // pred_check
      %p794 = pneg %p793
    $region54: #{_lambda_.3} parent=5 // pred_check_branch
      %796 = sbr.rel (%p794) target = $region56
    $region55: #{_lambda_.3} parent=5 // pred_region
      %s797 = ssub.s32 %s13, 2
      // Predicated region
      $region57: #{_lambda_.3} parent=55 // pred_check
        %p798 = pneg %p194
      $region58: #{_lambda_.3} parent=55 // pred_check_branch
        %800 = sbr.rel (%p798) target = $region60
      $region59: #{_lambda_.3} parent=55 // pred_region
        %p801 = scmp.lt.s32.totalorder %s19, 1
        %s802 = scalar_select %p801, %s19, 1
        %s803 = smul.addr %s802, 8
        %s804 = scalar_lea.vmem %s7, %s803
      $region60: #{_lambda_.3} parent=55 // pred_fallthru
        _
    $region56: #{_lambda_.3} parent=5 // pred_fallthru
      _
  $region6: #{_lambda_.3} parent=0 // loop_footer
    %s17 = sadd.s32 1, %s13
  $region7: #{_lambda_.3} parent=0 // loop_footer_branch
    %12 = sbr.rel target = $region3
  $region8: #{_lambda_.3} parent=0 // loop_exit
    _

// kernel: _lambda_.2
$region0: #{_lambda_.2}
  #allocation0 [shape = 'u32[]', space=smem, size = 0x4, offset = 0x4, fixed_abs, tag = 'smem constant byte address 0x4 - core index']
  #allocation1 [shape = 'u32[72,128]{1,0:T(1,128)}', space=vmem, size = 0x9000, scoped, tag = 'internal scratch']
  #allocation2 [shape = 'f32[1,9,256]{2,1,0:T(8,128)}', space=vmem, size = 0x4000, scoped, tag = 'scratch operand']
  #allocation3 [shape = 'f32[1,10,128]{2,1,0:T(8,128)}', space=vmem, size = 0x2000, scoped, tag = 'scratch operand']
  %s0 = inlined_call_operand.vmem [shape: f32[2,8,256], index: 0, kind: input, shape index: {}]
  %s1 = inlined_call_operand.vmem [shape: f32[1,1,256], index: 1, kind: input, shape index: {}]
  %s2 = inlined_call_operand.vmem [shape: f32[1,1,256], index: 2, kind: input, shape index: {}]
  %s3 = inlined_call_operand.vmem [shape: bf16[2,256,128], index: 3, kind: input, shape index: {}]
  %s4 = inlined_call_operand.vmem [shape: f32[1,1,128], index: 4, kind: input, shape index: {}]
  %s5 = inlined_call_operand.vmem [shape: f32[1,1,128], index: 5, kind: input, shape index: {}]
  %s6 = inlined_call_operand.vmem [shape: bf16[3,128,128], index: 6, kind: input, shape index: {}]
  %s7 = inlined_call_operand.vmem [shape: bf16[256,128], index: 7, kind: input, shape index: {}]
  %s8 = inlined_call_operand.vmem [shape: f32[2,8,128], index: 8, kind: output, shape index: {}]
  %s9 = sld [smem:[#allocation0]]
  $region65: #{_lambda_.2} parent=0
    _
  %s11 = ssub.s32 1, %s9
  %s12 = scalar_select 0, %s11, %s9
  loop: start=0, step=1, limit=4
  $region2: #{_lambda_.2} parent=0 // loop_pre_header
    _
  $region3: #{_lambda_.2} parent=0 // loop_header
    %s14 = sphi 0, %s18
    %p15 = scmp.ge.s32.totalorder %s14, 4
    %s24 = sphi 0, %s26
    %s27 = sphi 0, %s24
    %s28 = sphi 0, %s27
    %s44 = sphi 0, %s28
    %s48 = sphi 0, %s48
    %s50 = sphi 0, %s48
    %s51 = sphi 0, %s50
    %s65 = sphi 0, %s51
    %s69 = sphi 0, %s69
    %s71 = sphi 0, %s69
    %s72 = sphi 0, %s71
    %s86 = sphi 0, %s72
    %s90 = sphi 0, %s90
    %s92 = sphi 0, %s90
    %s93 = sphi 0, %s92
    %s107 = sphi 0, %s93
    %s111 = sphi 0, %s111
    %s113 = sphi 0, %s111
    %s114 = sphi 0, %s113
    %s128 = sphi 0, %s114
    %s132 = sphi 0, %s132
    %s134 = sphi 0, %s132
    %s135 = sphi 0, %s134
    %s149 = sphi 0, %s135
    %s153 = sphi 0, %s153
    %s155 = sphi 0, %s153
    %s156 = sphi 0, %s155
    %s170 = sphi 0, %s156
    %s174 = sphi 0, %s174
    %s176 = sphi 0, %s174
    %s177 = sphi 0, %s176
    %s191 = sphi 0, %s177
    %s197 = sphi 0, %s199
    %s200 = sphi 0, %s197
    %s201 = sphi 0, %s200
    %s217 = sphi 0, %s201
  $region4: #{_lambda_.2} parent=0 // loop_header_branch
    %17 = sbr.rel (%p15) target = $region8
  $region5: #{_lambda_.2} parent=0 // loop_body
    %s19 = ssub.s32 %s14, 1
    %s20 = ssub.s32 %s14, 2
    %s21 = sadd.s32 %s14, 1
    %s22 = ssub.s32 %s14, %s21
    %p23 = scmp.eq.s32.totalorder %s22, 0
    %s25 = sadd.s32 %s24, 1
    %s26 = scalar_select %p23, %s24, %s25
    %p29 = pneg %p23
    %p30 = scmp.eq.s32.totalorder %s14, 1
    %p31 = por %p29, %p30
    %p32 = scmp.ne.s32.totalorder %s24, %s27
    %p33 = scmp.eq.s32.totalorder %s14, 0
    %p34 = por %p32, %p33
    %p35 = scmp.ne.s32.totalorder %s24, %s27
    %p36 = scmp.eq.s32.totalorder %s19, 1
    %p37 = por %p35, %p36
    %p38 = scmp.ne.s32.totalorder %s27, %s28
    %p39 = scmp.eq.s32.totalorder %s19, 0
    %p40 = por %p38, %p39
    %p41 = scmp.ne.s32.totalorder %s27, %s28
    %p42 = scmp.eq.s32.totalorder %s20, 1
    %p43 = por %p41, %p42
    %p45 = scmp.ne.s32.totalorder %s28, %s44
    %p46 = scmp.eq.s32.totalorder %s20, 0
    %p47 = por %p45, %p46
    %s49 = sadd.s32 %s48, 1
    %p52 = scmp.eq.s32.totalorder %s14, 1
    %p53 = scmp.ne.s32.totalorder %s48, %s50
    %p54 = scmp.eq.s32.totalorder %s14, 0
    %p55 = por %p53, %p54
    %p56 = scmp.ne.s32.totalorder %s48, %s50
    %p57 = scmp.eq.s32.totalorder %s19, 1
    %p58 = por %p56, %p57
    %p59 = scmp.ne.s32.totalorder %s50, %s51
    %p60 = scmp.eq.s32.totalorder %s19, 0
    %p61 = por %p59, %p60
    %p62 = scmp.ne.s32.totalorder %s50, %s51
    %p63 = scmp.eq.s32.totalorder %s20, 1
    %p64 = por %p62, %p63
    %p66 = scmp.ne.s32.totalorder %s51, %s65
    %p67 = scmp.eq.s32.totalorder %s20, 0
    %p68 = por %p66, %p67
    %s70 = sadd.s32 %s69, 1
    %p73 = scmp.eq.s32.totalorder %s14, 1
    %p74 = scmp.ne.s32.totalorder %s69, %s71
    %p75 = scmp.eq.s32.totalorder %s14, 0
    %p76 = por %p74, %p75
    %p77 = scmp.ne.s32.totalorder %s69, %s71
    %p78 = scmp.eq.s32.totalorder %s19, 1
    %p79 = por %p77, %p78
    %p80 = scmp.ne.s32.totalorder %s71, %s72
    %p81 = scmp.eq.s32.totalorder %s19, 0
    %p82 = por %p80, %p81
    %p83 = scmp.ne.s32.totalorder %s71, %s72
    %p84 = scmp.eq.s32.totalorder %s20, 1
    %p85 = por %p83, %p84
    %p87 = scmp.ne.s32.totalorder %s72, %s86
    %p88 = scmp.eq.s32.totalorder %s20, 0
    %p89 = por %p87, %p88
    %s91 = sadd.s32 %s90, 1
    %p94 = scmp.eq.s32.totalorder %s14, 1
    %p95 = scmp.ne.s32.totalorder %s90, %s92
    %p96 = scmp.eq.s32.totalorder %s14, 0
    %p97 = por %p95, %p96
    %p98 = scmp.ne.s32.totalorder %s90, %s92
    %p99 = scmp.eq.s32.totalorder %s19, 1
    %p100 = por %p98, %p99
    %p101 = scmp.ne.s32.totalorder %s92, %s93
    %p102 = scmp.eq.s32.totalorder %s19, 0
    %p103 = por %p101, %p102
    %p104 = scmp.ne.s32.totalorder %s92, %s93
    %p105 = scmp.eq.s32.totalorder %s20, 1
    %p106 = por %p104, %p105
    %p108 = scmp.ne.s32.totalorder %s93, %s107
    %p109 = scmp.eq.s32.totalorder %s20, 0
    %p110 = por %p108, %p109
    %s112 = sadd.s32 %s111, 1
    %p115 = scmp.eq.s32.totalorder %s14, 1
    %p116 = scmp.ne.s32.totalorder %s111, %s113
    %p117 = scmp.eq.s32.totalorder %s14, 0
    %p118 = por %p116, %p117
    %p119 = scmp.ne.s32.totalorder %s111, %s113
    %p120 = scmp.eq.s32.totalorder %s19, 1
    %p121 = por %p119, %p120
    %p122 = scmp.ne.s32.totalorder %s113, %s114
    %p123 = scmp.eq.s32.totalorder %s19, 0
    %p124 = por %p122, %p123
    %p125 = scmp.ne.s32.totalorder %s113, %s114
    %p126 = scmp.eq.s32.totalorder %s20, 1
    %p127 = por %p125, %p126
    %p129 = scmp.ne.s32.totalorder %s114, %s128
    %p130 = scmp.eq.s32.totalorder %s20, 0
    %p131 = por %p129, %p130
    %s133 = sadd.s32 %s132, 1
    %p136 = scmp.eq.s32.totalorder %s14, 1
    %p137 = scmp.ne.s32.totalorder %s132, %s134
    %p138 = scmp.eq.s32.totalorder %s14, 0
    %p139 = por %p137, %p138
    %p140 = scmp.ne.s32.totalorder %s132, %s134
    %p141 = scmp.eq.s32.totalorder %s19, 1
    %p142 = por %p140, %p141
    %p143 = scmp.ne.s32.totalorder %s134, %s135
    %p144 = scmp.eq.s32.totalorder %s19, 0
    %p145 = por %p143, %p144
    %p146 = scmp.ne.s32.totalorder %s134, %s135
    %p147 = scmp.eq.s32.totalorder %s20, 1
    %p148 = por %p146, %p147
    %p150 = scmp.ne.s32.totalorder %s135, %s149
    %p151 = scmp.eq.s32.totalorder %s20, 0
    %p152 = por %p150, %p151
    %s154 = sadd.s32 %s153, 1
    %p157 = scmp.eq.s32.totalorder %s14, 1
    %p158 = scmp.ne.s32.totalorder %s153, %s155
    %p159 = scmp.eq.s32.totalorder %s14, 0
    %p160 = por %p158, %p159
    %p161 = scmp.ne.s32.totalorder %s153, %s155
    %p162 = scmp.eq.s32.totalorder %s19, 1
    %p163 = por %p161, %p162
    %p164 = scmp.ne.s32.totalorder %s155, %s156
    %p165 = scmp.eq.s32.totalorder %s19, 0
    %p166 = por %p164, %p165
    %p167 = scmp.ne.s32.totalorder %s155, %s156
    %p168 = scmp.eq.s32.totalorder %s20, 1
    %p169 = por %p167, %p168
    %p171 = scmp.ne.s32.totalorder %s156, %s170
    %p172 = scmp.eq.s32.totalorder %s20, 0
    %p173 = por %p171, %p172
    %s175 = sadd.s32 %s174, 1
    %p178 = scmp.eq.s32.totalorder %s14, 1
    %p179 = scmp.ne.s32.totalorder %s174, %s176
    %p180 = scmp.eq.s32.totalorder %s14, 0
    %p181 = por %p179, %p180
    %p182 = scmp.ne.s32.totalorder %s174, %s176
    %p183 = scmp.eq.s32.totalorder %s19, 1
    %p184 = por %p182, %p183
    %p185 = scmp.ne.s32.totalorder %s176, %s177
    %p186 = scmp.eq.s32.totalorder %s19, 0
    %p187 = por %p185, %p186
    %p188 = scmp.ne.s32.totalorder %s176, %s177
    %p189 = scmp.eq.s32.totalorder %s20, 1
    %p190 = por %p188, %p189
    %p192 = scmp.ne.s32.totalorder %s177, %s191
    %p193 = scmp.eq.s32.totalorder %s20, 0
    %p194 = por %p192, %p193
    %s195 = ssub.s32 %s14, %s21
    %p196 = scmp.eq.s32.totalorder %s195, 0
    %s198 = sadd.s32 %s197, 1
    %s199 = scalar_select %p196, %s197, %s198
    %p202 = pneg %p196
    %p203 = scmp.eq.s32.totalorder %s14, 1
    %p204 = por %p202, %p203
    %p205 = scmp.ne.s32.totalorder %s197, %s200
    %p206 = scmp.eq.s32.totalorder %s14, 0
    %p207 = por %p205, %p206
    %p208 = scmp.ne.s32.totalorder %s197, %s200
    %p209 = scmp.eq.s32.totalorder %s19, 1
    %p210 = por %p208, %p209
    %p211 = scmp.ne.s32.totalorder %s200, %s201
    %p212 = scmp.eq.s32.totalorder %s19, 0
    %p213 = por %p211, %p212
    %p214 = scmp.ne.s32.totalorder %s200, %s201
    %p215 = scmp.eq.s32.totalorder %s20, 1
    %p216 = por %p214, %p215
    %p218 = scmp.ne.s32.totalorder %s201, %s217
    %p219 = scmp.eq.s32.totalorder %s20, 0
    %p220 = por %p218, %p219
    %p221 = scmp.le.s32.totalorder 1, %s14
    %p222 = scmp.lt.s32.totalorder %s14, 3
    %p223 = pnand %p221, %p222
    %p224 = pneg %p223
    // Predicated region
    $region9: #{_lambda_.2} parent=5 // pred_check
      _
    $region10: #{_lambda_.2} parent=5 // pred_check_branch
      %226 = sbr.rel (%p223) target = $region12
    $region11: #{_lambda_.2} parent=5 // pred_region
      %s227 = ssub.s32 %s14, 1
      // Predicated region
      $region13: #{_lambda_.2} parent=11 // pred_check
        %p228 = pneg %p61
      $region14: #{_lambda_.2} parent=11 // pred_check_branch
        %230 = sbr.rel (%p228) target = $region16
      $region15: #{_lambda_.2} parent=11 // pred_region
        _
      $region16: #{_lambda_.2} parent=11 // pred_fallthru
        _
      // Predicated region
      $region17: #{_lambda_.2} parent=11 // pred_check
        %p231 = pneg %p82
      $region18: #{_lambda_.2} parent=11 // pred_check_branch
        %233 = sbr.rel (%p231) target = $region20
      $region19: #{_lambda_.2} parent=11 // pred_region
        _
      $region20: #{_lambda_.2} parent=11 // pred_fallthru
        _
      // Predicated region
      $region21: #{_lambda_.2} parent=11 // pred_check
        %p234 = pneg %p103
      $region22: #{_lambda_.2} parent=11 // pred_check_branch
        %236 = sbr.rel (%p234) target = $region24
      $region23: #{_lambda_.2} parent=11 // pred_region
        _
      $region24: #{_lambda_.2} parent=11 // pred_fallthru
        _
      // Predicated region
      $region25: #{_lambda_.2} parent=11 // pred_check
        %p237 = pneg %p124
      $region26: #{_lambda_.2} parent=11 // pred_check_branch
        %239 = sbr.rel (%p237) target = $region28
      $region27: #{_lambda_.2} parent=11 // pred_region
        _
      $region28: #{_lambda_.2} parent=11 // pred_fallthru
        _
      // Predicated region
      $region29: #{_lambda_.2} parent=11 // pred_check
        %p240 = pneg %p145
      $region30: #{_lambda_.2} parent=11 // pred_check_branch
        %242 = sbr.rel (%p240) target = $region32
      $region31: #{_lambda_.2} parent=11 // pred_region
        _
      $region32: #{_lambda_.2} parent=11 // pred_fallthru
        _
      // Predicated region
      $region33: #{_lambda_.2} parent=11 // pred_check
        %p243 = pneg %p166
      $region34: #{_lambda_.2} parent=11 // pred_check_branch
        %245 = sbr.rel (%p243) target = $region36
      $region35: #{_lambda_.2} parent=11 // pred_region
        _
      $region36: #{_lambda_.2} parent=11 // pred_fallthru
        _
      // Predicated region
      $region37: #{_lambda_.2} parent=11 // pred_check
        %p246 = pneg %p187
      $region38: #{_lambda_.2} parent=11 // pred_check_branch
        %248 = sbr.rel (%p246) target = $region40
      $region39: #{_lambda_.2} parent=11 // pred_region
        _
      $region40: #{_lambda_.2} parent=11 // pred_fallthru
        _
    $region12: #{_lambda_.2} parent=5 // pred_fallthru
      _
    %p249 = scmp.lt.s32.totalorder %s14, 2
    // Predicated region
    $region41: #{_lambda_.2} parent=5 // pred_check
      %p250 = pneg %p249
    $region42: #{_lambda_.2} parent=5 // pred_check_branch
      %252 = sbr.rel (%p250) target = $region44
    $region43: #{_lambda_.2} parent=5 // pred_region
      // Predicated region
      $region45: #{_lambda_.2} parent=43 // pred_check
        %p253 = pneg %p34
      $region46: #{_lambda_.2} parent=43 // pred_check_branch
        %255 = sbr.rel (%p253) target = $region48
      $region47: #{_lambda_.2} parent=43 // pred_region
        %p256 = scmp.lt.s32.totalorder %s14, 1
        %s257 = scalar_select %p256, %s14, 1
        %s258 = smul.addr %s257, 2
        %s259 = smul.addr %s258, 8
        %s260 = scalar_lea.vmem %s0, %s259
      $region48: #{_lambda_.2} parent=43 // pred_fallthru
        _
    $region44: #{_lambda_.2} parent=5 // pred_fallthru
      _
    %p261 = scmp.le.s32.totalorder 1, %s14
    %p262 = scmp.lt.s32.totalorder %s14, 3
    %p263 = pnand %p261, %p262
    %p264 = pneg %p263
    // Predicated region
    $region49: #{_lambda_.2} parent=5 // pred_check
      _
    $region50: #{_lambda_.2} parent=5 // pred_check_branch
      %266 = sbr.rel (%p263) target = $region52
    $region51: #{_lambda_.2} parent=5 // pred_region
      %s267 = ssub.s32 %s14, 1
      %p268 = scmp.lt.s32.totalorder %s19, 1
      %s269 = scalar_select %p268, %s19, 1
      %s270 = smul.addr %s269, 2
      %s271 = smul.addr %s270, 8
      %s272 = scalar_lea.vmem %s0, %s271
      %p273 = pneg %p40
      %p274 = pneg %p37
      %p275 = pneg %p61
      %p276 = pneg %p58
      %p277 = pneg %p82
      %p278 = pneg %p79
      %p279 = pneg %p103
      %p280 = pneg %p100
      %p281 = pneg %p124
      %p282 = pneg %p121
      %p283 = pneg %p145
      %p284 = pneg %p142
      %p285 = pneg %p166
      %p286 = pneg %p163
      %p287 = pneg %p187
      %p288 = pneg %p184
      %p289 = pneg %p213
      %p290 = pneg %p210
      %p291 = scmp.lt.s32.totalorder %s19, 1
      %s292 = scalar_select %p291, %s19, 1
      %s293 = smul.addr %s292, 8
      %s294 = scalar_lea.vmem %s8, %s293
      %p295 = scmp.lt.s32.totalorder %s19, 1
      %s296 = scalar_select %p295, %s19, 1
      %s297 = smul.addr %s296, 2
      %s298 = smul.addr %s297, 8
      %s299 = scalar_lea.vmem %s0, %s298
      %p300 = scmp.lt.s32.totalorder %s19, 1
      %s301 = scalar_select %p300, %s19, 1
      %s302 = smul.addr %s301, 8
      %s303 = scalar_lea.vmem %s8, %s302
      %v304 = vld [vmem:[%s299] sm:$0xff]
      %v305 = vld [vmem:[%s299 + $0x8] sm:$0xff]
      %v306 = vld [vmem:[%s1] sm:$0x3]
      %v308 = vperm.slane %v306, 0
      %v309 = vperm.slane %v306, 1
      %v312 = vmul.f32 %v304, %v308
      %v313 = vmul.f32 %v305, %v309
      %v314 = vld [vmem:[%s2] sm:$0x3]
      %v316 = vperm.slane %v314, 0
      %v317 = vperm.slane %v314, 1
      %v320 = vadd.f32 %v312, %v316
      %v321 = vadd.f32 %v313, %v317
      %v322 = vmax.f32 %v320, 0.0
      %v323 = vmax.f32 %v321, 0.0
      %v324 = vlaneseq
      %vm325 = vcmp.ge.s32.totalorder %v324, 0
      %vm326 = vcmp.lt.s32.totalorder %v324, 256
      %vm327 = vmand %vm325, %vm326
      %328 = vst.msk [vmem:[#allocation2] ss:$8 sm:$0x3] %vm327, 0.0
      %329 = vst.msk [vmem:[#allocation2] ss:$8 sm:$0x0] %vm327, 0.0
      %v332 = vrot.slane %v322, 7
      %v333 = vrot.slane %v323, 7
      %336 = vst [vmem:[#allocation2] sm:$0xfe] %v332
      %337 = vst [vmem:[#allocation2 + $0x8] sm:$0xfe] %v333
      %338 = vst [vmem:[#allocation2 + $0x10] sm:$0x1] %v332
      %339 = vst [vmem:[#allocation2 + $0x18] sm:$0x1] %v333
      %v340 = vld [vmem:[#allocation2] sm:$0xff]
      %v341 = vld [vmem:[#allocation2 + $0x8] sm:$0xff]
      %v342 = vpack.c.bf16 %v340, %v340
      %v343 = vpack.c.bf16 %v341, %v341
      %v344 = vld [vmem:[%s3] sm:$0xf]
      %v345 = vld [vmem:[%s3 + $0x4] sm:$0xf]
      %v346 = vld [vmem:[%s3 + $0x8] sm:$0xf]
      %v347 = vld [vmem:[%s3 + $0xc] sm:$0xf]
      %v348 = vld [vmem:[%s3 + $0x10] sm:$0xf]
      %v349 = vld [vmem:[%s3 + $0x14] sm:$0xf]
      %v350 = vld [vmem:[%s3 + $0x18] sm:$0xf]
      %v351 = vld [vmem:[%s3 + $0x1c] sm:$0xf]
      %v352 = vld [vmem:[%s3 + $0x20] sm:$0xf]
      %v353 = vld [vmem:[%s3 + $0x24] sm:$0xf]
      %v354 = vld [vmem:[%s3 + $0x28] sm:$0xf]
      %v355 = vld [vmem:[%s3 + $0x2c] sm:$0xf]
      %v356 = vld [vmem:[%s3 + $0x30] sm:$0xf]
      %v357 = vld [vmem:[%s3 + $0x34] sm:$0xf]
      %v358 = vld [vmem:[%s3 + $0x38] sm:$0xf]
      %v359 = vld [vmem:[%s3 + $0x3c] sm:$0xf]
      %v360 = vld [vmem:[%s3 + $0x40] sm:$0xf]
      %v361 = vld [vmem:[%s3 + $0x44] sm:$0xf]
      %v362 = vld [vmem:[%s3 + $0x48] sm:$0xf]
      %v363 = vld [vmem:[%s3 + $0x4c] sm:$0xf]
      %v364 = vld [vmem:[%s3 + $0x50] sm:$0xf]
      %v365 = vld [vmem:[%s3 + $0x54] sm:$0xf]
      %v366 = vld [vmem:[%s3 + $0x58] sm:$0xf]
      %v367 = vld [vmem:[%s3 + $0x5c] sm:$0xf]
      %v368 = vld [vmem:[%s3 + $0x60] sm:$0xf]
      %v369 = vld [vmem:[%s3 + $0x64] sm:$0xf]
      %v370 = vld [vmem:[%s3 + $0x68] sm:$0xf]
      %v371 = vld [vmem:[%s3 + $0x6c] sm:$0xf]
      %v372 = vld [vmem:[%s3 + $0x70] sm:$0xf]
      %v373 = vld [vmem:[%s3 + $0x74] sm:$0xf]
      %v374 = vld [vmem:[%s3 + $0x78] sm:$0xf]
      %v375 = vld [vmem:[%s3 + $0x7c] sm:$0xf]
      %v376 = vld [vmem:[#allocation2] sm:$0xfe]
      %v377 = vld [vmem:[#allocation2 + $0x8] sm:$0xfe]
      %v378 = vld [vmem:[#allocation2 + $0x10] sm:$0x1]
      %v379 = vld [vmem:[#allocation2 + $0x18] sm:$0x1]
      %v380 = vpack.c.bf16 %v378, %v376
      %v381 = vpack.c.bf16 %v379, %v377
      %s382 = scalar_lea.vmem %s3, 128
      %v383 = vld [vmem:[%s382] sm:$0xf]
      %v384 = vld [vmem:[%s382 + $0x4] sm:$0xf]
      %v385 = vld [vmem:[%s382 + $0x8] sm:$0xf]
      %v386 = vld [vmem:[%s382 + $0xc] sm:$0xf]
      %v387 = vld [vmem:[%s382 + $0x10] sm:$0xf]
      %v388 = vld [vmem:[%s382 + $0x14] sm:$0xf]
      %v389 = vld [vmem:[%s382 + $0x18] sm:$0xf]
      %v390 = vld [vmem:[%s382 + $0x1c] sm:$0xf]
      %v391 = vld [vmem:[%s382 + $0x20] sm:$0xf]
      %v392 = vld [vmem:[%s382 + $0x24] sm:$0xf]
      %v393 = vld [vmem:[%s382 + $0x28] sm:$0xf]
      %v394 = vld [vmem:[%s382 + $0x2c] sm:$0xf]
      %v395 = vld [vmem:[%s382 + $0x30] sm:$0xf]
      %v396 = vld [vmem:[%s382 + $0x34] sm:$0xf]
      %v397 = vld [vmem:[%s382 + $0x38] sm:$0xf]
      %v398 = vld [vmem:[%s382 + $0x3c] sm:$0xf]
      %v399 = vld [vmem:[%s382 + $0x40] sm:$0xf]
      %v400 = vld [vmem:[%s382 + $0x44] sm:$0xf]
      %v401 = vld [vmem:[%s382 + $0x48] sm:$0xf]
      %v402 = vld [vmem:[%s382 + $0x4c] sm:$0xf]
      %v403 = vld [vmem:[%s382 + $0x50] sm:$0xf]
      %v404 = vld [vmem:[%s382 + $0x54] sm:$0xf]
      %v405 = vld [vmem:[%s382 + $0x58] sm:$0xf]
      %v406 = vld [vmem:[%s382 + $0x5c] sm:$0xf]
      %v407 = vld [vmem:[%s382 + $0x60] sm:$0xf]
      %v408 = vld [vmem:[%s382 + $0x64] sm:$0xf]
      %v409 = vld [vmem:[%s382 + $0x68] sm:$0xf]
      %v410 = vld [vmem:[%s382 + $0x6c] sm:$0xf]
      %v411 = vld [vmem:[%s382 + $0x70] sm:$0xf]
      %v412 = vld [vmem:[%s382 + $0x74] sm:$0xf]
      %v413 = vld [vmem:[%s382 + $0x78] sm:$0xf]
      %v414 = vld [vmem:[%s382 + $0x7c] sm:$0xf]
      %v416 = vshrl.u32 %v380, 16
      %v418 = vshll.u32 %v380, 16
      %v420 = vrot.slane %v418, 1
      %v421 = vor.u32 %v416, %v420
      %v423 = vshrl.u32 %v381, 16
      %v425 = vshll.u32 %v381, 16
      %v427 = vrot.slane %v425, 1
      %v428 = vor.u32 %v423, %v427
      %v463 = vunpack.c.l.b16 %v383
      %v464 = vunpack.c.l.b16 %v384
      %v465 = vunpack.c.l.b16 %v385
      %v466 = vunpack.c.l.b16 %v386
      %v467 = vunpack.c.l.b16 %v387
      %v468 = vunpack.c.l.b16 %v388
      %v469 = vunpack.c.l.b16 %v389
      %v470 = vunpack.c.l.b16 %v390
      %v471 = vunpack.c.l.b16 %v391
      %v472 = vunpack.c.l.b16 %v392
      %v473 = vunpack.c.l.b16 %v393
      %v474 = vunpack.c.l.b16 %v394
      %v475 = vunpack.c.l.b16 %v395
      %v476 = vunpack.c.l.b16 %v396
      %v477 = vunpack.c.l.b16 %v397
      %v478 = vunpack.c.l.b16 %v398
      %v479 = vunpack.c.l.b16 %v399
      %v480 = vunpack.c.l.b16 %v400
      %v481 = vunpack.c.l.b16 %v401
      %v482 = vunpack.c.l.b16 %v402
      %v483 = vunpack.c.l.b16 %v403
      %v484 = vunpack.c.l.b16 %v404
      %v485 = vunpack.c.l.b16 %v405
      %v486 = vunpack.c.l.b16 %v406
      %v487 = vunpack.c.l.b16 %v407
      %v488 = vunpack.c.l.b16 %v408
      %v489 = vunpack.c.l.b16 %v409
      %v490 = vunpack.c.l.b16 %v410
      %v491 = vunpack.c.l.b16 %v411
      %v492 = vunpack.c.l.b16 %v412
      %v493 = vunpack.c.l.b16 %v413
      %v494 = vunpack.c.l.b16 %v414
      %v495 = vpack.c.b16 %v464, %v463
      %v496 = vpack.c.b16 %v466, %v465
      %v497 = vpack.c.b16 %v468, %v467
      %v498 = vpack.c.b16 %v470, %v469
      %v499 = vpack.c.b16 %v472, %v471
      %v500 = vpack.c.b16 %v474, %v473
      %v501 = vpack.c.b16 %v476, %v475
      %v502 = vpack.c.b16 %v478, %v477
      %v503 = vpack.c.b16 %v480, %v479
      %v504 = vpack.c.b16 %v482, %v481
      %v505 = vpack.c.b16 %v484, %v483
      %v506 = vpack.c.b16 %v486, %v485
      %v507 = vpack.c.b16 %v488, %v487
      %v508 = vpack.c.b16 %v490, %v489
      %v509 = vpack.c.b16 %v492, %v491
      %v510 = vpack.c.b16 %v494, %v493
      %527 = vmatpush.bf16.msra.mxu0 %v502
      %528 = vmatpush.bf16.msra.mxu0 %v501
      %529 = vmatpush.bf16.msra.mxu0 %v500
      %530 = vmatpush.bf16.msra.mxu0 %v499
      %531 = vmatpush.bf16.msra.mxu0 %v498
      %532 = vmatpush.bf16.msra.mxu0 %v497
      %533 = vmatpush.bf16.msra.mxu0 %v496
      %534 = vmatpush.bf16.msra.mxu0 %v495
      %535 = vmatmul.bf16.gmra.mxu0 %v421
      %v536 = vpop.f32.mrf.mxu0
      %v537 = vadd.f32 0.0, %v536
      %v538 = vpop.f32.mrf.mxu0
      %539 = vdwg.mxu0
      %540 = vmatpush.bf16.msra.mxu0 %v510
      %541 = vmatpush.bf16.msra.mxu0 %v509
      %542 = vmatpush.bf16.msra.mxu0 %v508
      %543 = vmatpush.bf16.msra.mxu0 %v507
      %544 = vmatpush.bf16.msra.mxu0 %v506
      %545 = vmatpush.bf16.msra.mxu0 %v505
      %546 = vmatpush.bf16.msra.mxu0 %v504
      %547 = vmatpush.bf16.msra.mxu0 %v503
      %548 = vmatmul.bf16.gmra.mxu0 %v428
      %v549 = vpop.f32.mrf.mxu0
      %v550 = vadd.f32 %v537, %v549
      %v551 = vpop.f32.mrf.mxu0
      %552 = vdwg.mxu0
      %v585 = vunpack.c.l.b16 %v344
      %v586 = vunpack.c.l.b16 %v345
      %v587 = vunpack.c.l.b16 %v346
      %v588 = vunpack.c.l.b16 %v347
      %v589 = vunpack.c.l.b16 %v348
      %v590 = vunpack.c.l.b16 %v349
      %v591 = vunpack.c.l.b16 %v350
      %v592 = vunpack.c.l.b16 %v351
      %v593 = vunpack.c.l.b16 %v352
      %v594 = vunpack.c.l.b16 %v353
      %v595 = vunpack.c.l.b16 %v354
      %v596 = vunpack.c.l.b16 %v355
      %v597 = vunpack.c.l.b16 %v356
      %v598 = vunpack.c.l.b16 %v357
      %v599 = vunpack.c.l.b16 %v358
      %v600 = vunpack.c.l.b16 %v359
      %v601 = vunpack.c.l.b16 %v360
      %v602 = vunpack.c.l.b16 %v361
      %v603 = vunpack.c.l.b16 %v362
      %v604 = vunpack.c.l.b16 %v363
      %v605 = vunpack.c.l.b16 %v364
      %v606 = vunpack.c.l.b16 %v365
      %v607 = vunpack.c.l.b16 %v366
      %v608 = vunpack.c.l.b16 %v367
      %v609 = vunpack.c.l.b16 %v368
      %v610 = vunpack.c.l.b16 %v369
      %v611 = vunpack.c.l.b16 %v370
      %v612 = vunpack.c.l.b16 %v371
      %v613 = vunpack.c.l.b16 %v372
      %v614 = vunpack.c.l.b16 %v373
      %v615 = vunpack.c.l.b16 %v374
      %v616 = vunpack.c.l.b16 %v375
      %v617 = vpack.c.b16 %v586, %v585
      %v618 = vpack.c.b16 %v588, %v587
      %v619 = vpack.c.b16 %v590, %v589
      %v620 = vpack.c.b16 %v592, %v591
      %v621 = vpack.c.b16 %v594, %v593
      %v622 = vpack.c.b16 %v596, %v595
      %v623 = vpack.c.b16 %v598, %v597
      %v624 = vpack.c.b16 %v600, %v599
      %v625 = vpack.c.b16 %v602, %v601
      %v626 = vpack.c.b16 %v604, %v603
      %v627 = vpack.c.b16 %v606, %v605
      %v628 = vpack.c.b16 %v608, %v607
      %v629 = vpack.c.b16 %v610, %v609
      %v630 = vpack.c.b16 %v612, %v611
      %v631 = vpack.c.b16 %v614, %v613
      %v632 = vpack.c.b16 %v616, %v615
      %649 = vmatpush.bf16.msra.mxu0 %v624
      %650 = vmatpush.bf16.msra.mxu0 %v623
      %651 = vmatpush.bf16.msra.mxu0 %v622
      %652 = vmatpush.bf16.msra.mxu0 %v621
      %653 = vmatpush.bf16.msra.mxu0 %v620
      %654 = vmatpush.bf16.msra.mxu0 %v619
      %655 = vmatpush.bf16.msra.mxu0 %v618
      %656 = vmatpush.bf16.msra.mxu0 %v617
      %657 = vmatmul.bf16.gmra.mxu0 %v342
      %v658 = vpop.f32.mrf.mxu0
      %v659 = vadd.f32 %v550, %v658
      %v660 = vpop.f32.mrf.mxu0
      %661 = vdwg.mxu0
      %662 = vmatpush.bf16.msra.mxu0 %v632
      %663 = vmatpush.bf16.msra.mxu0 %v631
      %664 = vmatpush.bf16.msra.mxu0 %v630
      %665 = vmatpush.bf16.msra.mxu0 %v629
      %666 = vmatpush.bf16.msra.mxu0 %v628
      %667 = vmatpush.bf16.msra.mxu0 %v627
      %668 = vmatpush.bf16.msra.mxu0 %v626
      %669 = vmatpush.bf16.msra.mxu0 %v625
      %670 = vmatmul.bf16.gmra.mxu0 %v343
      %v671 = vpop.f32.mrf.mxu0
      %v672 = vadd.f32 %v659, %v671
      %v673 = vpop.f32.mrf.mxu0
      %674 = vdwg.mxu0
      %v675 = vld [vmem:[%s4] sm:$0x1]
      %v677 = vperm.slane %v675, 0
      %v679 = vmul.f32 %v672, %v677
      %v680 = vld [vmem:[%s5] sm:$0x1]
      %v682 = vperm.slane %v680, 0
      %v684 = vadd.f32 %v679, %v682
      %v685 = vmax.f32 %v684, 0.0
      %686 = vst [vmem:[#allocation3] sm:$0x1] 0.0
      %687 = vst [vmem:[#allocation3 + $0x9] sm:$0x1] 0.0
      %688 = vst [vmem:[#allocation3 + $0x1] sm:$0xff] %v685
      %v689 = vpack.c.bf16 %v322, %v322
      %v690 = vpack.c.bf16 %v323, %v323
      %v691 = vld [vmem:[%s7] sm:$0xf]
      %v692 = vld [vmem:[%s7 + $0x4] sm:$0xf]
      %v693 = vld [vmem:[%s7 + $0x8] sm:$0xf]
      %v694 = vld [vmem:[%s7 + $0xc] sm:$0xf]
      %v695 = vld [vmem:[%s7 + $0x10] sm:$0xf]
      %v696 = vld [vmem:[%s7 + $0x14] sm:$0xf]
      %v697 = vld [vmem:[%s7 + $0x18] sm:$0xf]
      %v698 = vld [vmem:[%s7 + $0x1c] sm:$0xf]
      %v699 = vld [vmem:[%s7 + $0x20] sm:$0xf]
      %v700 = vld [vmem:[%s7 + $0x24] sm:$0xf]
      %v701 = vld [vmem:[%s7 + $0x28] sm:$0xf]
      %v702 = vld [vmem:[%s7 + $0x2c] sm:$0xf]
      %v703 = vld [vmem:[%s7 + $0x30] sm:$0xf]
      %v704 = vld [vmem:[%s7 + $0x34] sm:$0xf]
      %v705 = vld [vmem:[%s7 + $0x38] sm:$0xf]
      %v706 = vld [vmem:[%s7 + $0x3c] sm:$0xf]
      %v707 = vld [vmem:[%s7 + $0x40] sm:$0xf]
      %v708 = vld [vmem:[%s7 + $0x44] sm:$0xf]
      %v709 = vld [vmem:[%s7 + $0x48] sm:$0xf]
      %v710 = vld [vmem:[%s7 + $0x4c] sm:$0xf]
      %v711 = vld [vmem:[%s7 + $0x50] sm:$0xf]
      %v712 = vld [vmem:[%s7 + $0x54] sm:$0xf]
      %v713 = vld [vmem:[%s7 + $0x58] sm:$0xf]
      %v714 = vld [vmem:[%s7 + $0x5c] sm:$0xf]
      %v715 = vld [vmem:[%s7 + $0x60] sm:$0xf]
      %v716 = vld [vmem:[%s7 + $0x64] sm:$0xf]
      %v717 = vld [vmem:[%s7 + $0x68] sm:$0xf]
      %v718 = vld [vmem:[%s7 + $0x6c] sm:$0xf]
      %v719 = vld [vmem:[%s7 + $0x70] sm:$0xf]
      %v720 = vld [vmem:[%s7 + $0x74] sm:$0xf]
      %v721 = vld [vmem:[%s7 + $0x78] sm:$0xf]
      %v722 = vld [vmem:[%s7 + $0x7c] sm:$0xf]
      %v723 = vld [vmem:[#allocation3] sm:$0xff]
      %v724 = vpack.c.bf16 %v723, %v723
      %v725 = vld [vmem:[%s6] sm:$0xf]
      %v726 = vld [vmem:[%s6 + $0x4] sm:$0xf]
      %v727 = vld [vmem:[%s6 + $0x8] sm:$0xf]
      %v728 = vld [vmem:[%s6 + $0xc] sm:$0xf]
      %v729 = vld [vmem:[%s6 + $0x10] sm:$0xf]
      %v730 = vld [vmem:[%s6 + $0x14] sm:$0xf]
      %v731 = vld [vmem:[%s6 + $0x18] sm:$0xf]
      %v732 = vld [vmem:[%s6 + $0x1c] sm:$0xf]
      %v733 = vld [vmem:[%s6 + $0x20] sm:$0xf]
      %v734 = vld [vmem:[%s6 + $0x24] sm:$0xf]
      %v735 = vld [vmem:[%s6 + $0x28] sm:$0xf]
      %v736 = vld [vmem:[%s6 + $0x2c] sm:$0xf]
      %v737 = vld [vmem:[%s6 + $0x30] sm:$0xf]
      %v738 = vld [vmem:[%s6 + $0x34] sm:$0xf]
      %v739 = vld [vmem:[%s6 + $0x38] sm:$0xf]
      %v740 = vld [vmem:[%s6 + $0x3c] sm:$0xf]
      %v757 = vunpack.c.l.b16 %v725
      %v758 = vunpack.c.l.b16 %v726
      %v759 = vunpack.c.l.b16 %v727
      %v760 = vunpack.c.l.b16 %v728
      %v761 = vunpack.c.l.b16 %v729
      %v762 = vunpack.c.l.b16 %v730
      %v763 = vunpack.c.l.b16 %v731
      %v764 = vunpack.c.l.b16 %v732
      %v765 = vunpack.c.l.b16 %v733
      %v766 = vunpack.c.l.b16 %v734
      %v767 = vunpack.c.l.b16 %v735
      %v768 = vunpack.c.l.b16 %v736
      %v769 = vunpack.c.l.b16 %v737
      %v770 = vunpack.c.l.b16 %v738
      %v771 = vunpack.c.l.b16 %v739
      %v772 = vunpack.c.l.b16 %v740
      %v773 = vpack.c.b16 %v758, %v757
      %v774 = vpack.c.b16 %v760, %v759
      %v775 = vpack.c.b16 %v762, %v761
      %v776 = vpack.c.b16 %v764, %v763
      %v777 = vpack.c.b16 %v766, %v765
      %v778 = vpack.c.b16 %v768, %v767
      %v779 = vpack.c.b16 %v770, %v769
      %v780 = vpack.c.b16 %v772, %v771
      %789 = vmatpush.bf16.msra.mxu0 %v780
      %790 = vmatpush.bf16.msra.mxu0 %v779
      %791 = vmatpush.bf16.msra.mxu0 %v778
      %792 = vmatpush.bf16.msra.mxu0 %v777
      %793 = vmatpush.bf16.msra.mxu0 %v776
      %794 = vmatpush.bf16.msra.mxu0 %v775
      %795 = vmatpush.bf16.msra.mxu0 %v774
      %796 = vmatpush.bf16.msra.mxu0 %v773
      %797 = vmatmul.bf16.gmra.mxu0 %v724
      %v798 = vpop.f32.mrf.mxu0
      %v799 = vadd.f32 0.0, %v798
      %v800 = vpop.f32.mrf.mxu0
      %801 = vdwg.mxu0
      %v834 = vunpack.c.l.b16 %v691
      %v835 = vunpack.c.l.b16 %v692
      %v836 = vunpack.c.l.b16 %v693
      %v837 = vunpack.c.l.b16 %v694
      %v838 = vunpack.c.l.b16 %v695
      %v839 = vunpack.c.l.b16 %v696
      %v840 = vunpack.c.l.b16 %v697
      %v841 = vunpack.c.l.b16 %v698
      %v842 = vunpack.c.l.b16 %v699
      %v843 = vunpack.c.l.b16 %v700
      %v844 = vunpack.c.l.b16 %v701
      %v845 = vunpack.c.l.b16 %v702
      %v846 = vunpack.c.l.b16 %v703
      %v847 = vunpack.c.l.b16 %v704
      %v848 = vunpack.c.l.b16 %v705
      %v849 = vunpack.c.l.b16 %v706
      %v850 = vunpack.c.l.b16 %v707
      %v851 = vunpack.c.l.b16 %v708
      %v852 = vunpack.c.l.b16 %v709
      %v853 = vunpack.c.l.b16 %v710
      %v854 = vunpack.c.l.b16 %v711
      %v855 = vunpack.c.l.b16 %v712
      %v856 = vunpack.c.l.b16 %v713
      %v857 = vunpack.c.l.b16 %v714
      %v858 = vunpack.c.l.b16 %v715
      %v859 = vunpack.c.l.b16 %v716
      %v860 = vunpack.c.l.b16 %v717
      %v861 = vunpack.c.l.b16 %v718
      %v862 = vunpack.c.l.b16 %v719
      %v863 = vunpack.c.l.b16 %v720
      %v864 = vunpack.c.l.b16 %v721
      %v865 = vunpack.c.l.b16 %v722
      %v866 = vpack.c.b16 %v835, %v834
      %v867 = vpack.c.b16 %v837, %v836
      %v868 = vpack.c.b16 %v839, %v838
      %v869 = vpack.c.b16 %v841, %v840
      %v870 = vpack.c.b16 %v843, %v842
      %v871 = vpack.c.b16 %v845, %v844
      %v872 = vpack.c.b16 %v847, %v846
      %v873 = vpack.c.b16 %v849, %v848
      %v874 = vpack.c.b16 %v851, %v850
      %v875 = vpack.c.b16 %v853, %v852
      %v876 = vpack.c.b16 %v855, %v854
      %v877 = vpack.c.b16 %v857, %v856
      %v878 = vpack.c.b16 %v859, %v858
      %v879 = vpack.c.b16 %v861, %v860
      %v880 = vpack.c.b16 %v863, %v862
      %v881 = vpack.c.b16 %v865, %v864
      %898 = vmatpush.bf16.msra.mxu0 %v873
      %899 = vmatpush.bf16.msra.mxu0 %v872
      %900 = vmatpush.bf16.msra.mxu0 %v871
      %901 = vmatpush.bf16.msra.mxu0 %v870
      %902 = vmatpush.bf16.msra.mxu0 %v869
      %903 = vmatpush.bf16.msra.mxu0 %v868
      %904 = vmatpush.bf16.msra.mxu0 %v867
      %905 = vmatpush.bf16.msra.mxu0 %v866
      %906 = vmatmul.bf16.gmra.mxu0 %v689
      %v907 = vpop.f32.mrf.mxu0
      %v908 = vadd.f32 %v799, %v907
      %v909 = vpop.f32.mrf.mxu0
      %910 = vdwg.mxu0
      %911 = vmatpush.bf16.msra.mxu0 %v881
      %912 = vmatpush.bf16.msra.mxu0 %v880
      %913 = vmatpush.bf16.msra.mxu0 %v879
      %914 = vmatpush.bf16.msra.mxu0 %v878
      %915 = vmatpush.bf16.msra.mxu0 %v877
      %916 = vmatpush.bf16.msra.mxu0 %v876
      %917 = vmatpush.bf16.msra.mxu0 %v875
      %918 = vmatpush.bf16.msra.mxu0 %v874
      %919 = vmatmul.bf16.gmra.mxu0 %v690
      %v920 = vpop.f32.mrf.mxu0
      %v921 = vadd.f32 %v908, %v920
      %v922 = vpop.f32.mrf.mxu0
      %923 = vdwg.mxu0
      %v924 = vld [vmem:[#allocation3 + $0x1] sm:$0xff]
      %v925 = vpack.c.bf16 %v924, %v924
      %s926 = scalar_lea.vmem %s6, 64
      %v927 = vld [vmem:[%s926] sm:$0xf]
      %v928 = vld [vmem:[%s926 + $0x4] sm:$0xf]
      %v929 = vld [vmem:[%s926 + $0x8] sm:$0xf]
      %v930 = vld [vmem:[%s926 + $0xc] sm:$0xf]
      %v931 = vld [vmem:[%s926 + $0x10] sm:$0xf]
      %v932 = vld [vmem:[%s926 + $0x14] sm:$0xf]
      %v933 = vld [vmem:[%s926 + $0x18] sm:$0xf]
      %v934 = vld [vmem:[%s926 + $0x1c] sm:$0xf]
      %v935 = vld [vmem:[%s926 + $0x20] sm:$0xf]
      %v936 = vld [vmem:[%s926 + $0x24] sm:$0xf]
      %v937 = vld [vmem:[%s926 + $0x28] sm:$0xf]
      %v938 = vld [vmem:[%s926 + $0x2c] sm:$0xf]
      %v939 = vld [vmem:[%s926 + $0x30] sm:$0xf]
      %v940 = vld [vmem:[%s926 + $0x34] sm:$0xf]
      %v941 = vld [vmem:[%s926 + $0x38] sm:$0xf]
      %v942 = vld [vmem:[%s926 + $0x3c] sm:$0xf]
      %v959 = vunpack.c.l.b16 %v927
      %v960 = vunpack.c.l.b16 %v928
      %v961 = vunpack.c.l.b16 %v929
      %v962 = vunpack.c.l.b16 %v930
      %v963 = vunpack.c.l.b16 %v931
      %v964 = vunpack.c.l.b16 %v932
      %v965 = vunpack.c.l.b16 %v933
      %v966 = vunpack.c.l.b16 %v934
      %v967 = vunpack.c.l.b16 %v935
      %v968 = vunpack.c.l.b16 %v936
      %v969 = vunpack.c.l.b16 %v937
      %v970 = vunpack.c.l.b16 %v938
      %v971 = vunpack.c.l.b16 %v939
      %v972 = vunpack.c.l.b16 %v940
      %v973 = vunpack.c.l.b16 %v941
      %v974 = vunpack.c.l.b16 %v942
      %v975 = vpack.c.b16 %v960, %v959
      %v976 = vpack.c.b16 %v962, %v961
      %v977 = vpack.c.b16 %v964, %v963
      %v978 = vpack.c.b16 %v966, %v965
      %v979 = vpack.c.b16 %v968, %v967
      %v980 = vpack.c.b16 %v970, %v969
      %v981 = vpack.c.b16 %v972, %v971
      %v982 = vpack.c.b16 %v974, %v973
      %991 = vmatpush.bf16.msra.mxu0 %v982
      %992 = vmatpush.bf16.msra.mxu0 %v981
      %993 = vmatpush.bf16.msra.mxu0 %v980
      %994 = vmatpush.bf16.msra.mxu0 %v979
      %995 = vmatpush.bf16.msra.mxu0 %v978
      %996 = vmatpush.bf16.msra.mxu0 %v977
      %997 = vmatpush.bf16.msra.mxu0 %v976
      %998 = vmatpush.bf16.msra.mxu0 %v975
      %999 = vmatmul.bf16.gmra.mxu0 %v925
      %v1000 = vpop.f32.mrf.mxu0
      %v1001 = vadd.f32 0.0, %v1000
      %v1002 = vpop.f32.mrf.mxu0
      %1003 = vdwg.mxu0
      %v1004 = vadd.f32 %v921, %v1001
      %v1005 = vld [vmem:[#allocation3 + $0x2] sm:$0xff]
      %v1006 = vpack.c.bf16 %v1005, %v1005
      %s1007 = scalar_lea.vmem %s6, 128
      %v1008 = vld [vmem:[%s1007] sm:$0xf]
      %v1009 = vld [vmem:[%s1007 + $0x4] sm:$0xf]
      %v1010 = vld [vmem:[%s1007 + $0x8] sm:$0xf]
      %v1011 = vld [vmem:[%s1007 + $0xc] sm:$0xf]
      %v1012 = vld [vmem:[%s1007 + $0x10] sm:$0xf]
      %v1013 = vld [vmem:[%s1007 + $0x14] sm:$0xf]
      %v1014 = vld [vmem:[%s1007 + $0x18] sm:$0xf]
      %v1015 = vld [vmem:[%s1007 + $0x1c] sm:$0xf]
      %v1016 = vld [vmem:[%s1007 + $0x20] sm:$0xf]
      %v1017 = vld [vmem:[%s1007 + $0x24] sm:$0xf]
      %v1018 = vld [vmem:[%s1007 + $0x28] sm:$0xf]
      %v1019 = vld [vmem:[%s1007 + $0x2c] sm:$0xf]
      %v1020 = vld [vmem:[%s1007 + $0x30] sm:$0xf]
      %v1021 = vld [vmem:[%s1007 + $0x34] sm:$0xf]
      %v1022 = vld [vmem:[%s1007 + $0x38] sm:$0xf]
      %v1023 = vld [vmem:[%s1007 + $0x3c] sm:$0xf]
      %v1040 = vunpack.c.l.b16 %v1008
      %v1041 = vunpack.c.l.b16 %v1009
      %v1042 = vunpack.c.l.b16 %v1010
      %v1043 = vunpack.c.l.b16 %v1011
      %v1044 = vunpack.c.l.b16 %v1012
      %v1045 = vunpack.c.l.b16 %v1013
      %v1046 = vunpack.c.l.b16 %v1014
      %v1047 = vunpack.c.l.b16 %v1015
      %v1048 = vunpack.c.l.b16 %v1016
      %v1049 = vunpack.c.l.b16 %v1017
      %v1050 = vunpack.c.l.b16 %v1018
      %v1051 = vunpack.c.l.b16 %v1019
      %v1052 = vunpack.c.l.b16 %v1020
      %v1053 = vunpack.c.l.b16 %v1021
      %v1054 = vunpack.c.l.b16 %v1022
      %v1055 = vunpack.c.l.b16 %v1023
      %v1056 = vpack.c.b16 %v1041, %v1040
      %v1057 = vpack.c.b16 %v1043, %v1042
      %v1058 = vpack.c.b16 %v1045, %v1044
      %v1059 = vpack.c.b16 %v1047, %v1046
      %v1060 = vpack.c.b16 %v1049, %v1048
      %v1061 = vpack.c.b16 %v1051, %v1050
      %v1062 = vpack.c.b16 %v1053, %v1052
      %v1063 = vpack.c.b16 %v1055, %v1054
      %1072 = vmatpush.bf16.msra.mxu0 %v1063
      %1073 = vmatpush.bf16.msra.mxu0 %v1062
      %1074 = vmatpush.bf16.msra.mxu0 %v1061
      %1075 = vmatpush.bf16.msra.mxu0 %v1060
      %1076 = vmatpush.bf16.msra.mxu0 %v1059
      %1077 = vmatpush.bf16.msra.mxu0 %v1058
      %1078 = vmatpush.bf16.msra.mxu0 %v1057
      %1079 = vmatpush.bf16.msra.mxu0 %v1056
      %1080 = vmatmul.bf16.gmra.mxu0 %v1006
      %v1081 = vpop.f32.mrf.mxu0
      %v1082 = vadd.f32 0.0, %v1081
      %v1083 = vpop.f32.mrf.mxu0
      %1084 = vdwg.mxu0
      %v1085 = vadd.f32 %v1004, %v1082
      %1086 = vst [vmem:[%s303] sm:$0xff] %v1085
      %p1087 = scmp.lt.s32.totalorder %s19, 1
      %s1088 = scalar_select %p1087, %s19, 1
      %s1089 = smul.addr %s1088, 8
      %s1090 = scalar_lea.vmem %s8, %s1089
      // Predicated region
      $region53: #{_lambda_.2} parent=51 // pred_check
        %p1091 = pneg %p210
      $region54: #{_lambda_.2} parent=51 // pred_check_branch
        %1093 = sbr.rel (%p1091) target = $region56
      $region55: #{_lambda_.2} parent=51 // pred_region
        _
      $region56: #{_lambda_.2} parent=51 // pred_fallthru
        _
    $region52: #{_lambda_.2} parent=5 // pred_fallthru
      _
    %p1094 = scmp.le.s32.totalorder 2, %s14
    // Predicated region
    $region57: #{_lambda_.2} parent=5 // pred_check
      %p1095 = pneg %p1094
    $region58: #{_lambda_.2} parent=5 // pred_check_branch
      %1097 = sbr.rel (%p1095) target = $region60
    $region59: #{_lambda_.2} parent=5 // pred_region
      %s1098 = ssub.s32 %s14, 2
      // Predicated region
      $region61: #{_lambda_.2} parent=59 // pred_check
        %p1099 = pneg %p216
      $region62: #{_lambda_.2} parent=59 // pred_check_branch
        %1101 = sbr.rel (%p1099) target = $region64
      $region63: #{_lambda_.2} parent=59 // pred_region
        %p1102 = scmp.lt.s32.totalorder %s20, 1
        %s1103 = scalar_select %p1102, %s20, 1
        %s1104 = smul.addr %s1103, 8
        %s1105 = scalar_lea.vmem %s8, %s1104
      $region64: #{_lambda_.2} parent=59 // pred_fallthru
        _
    $region60: #{_lambda_.2} parent=5 // pred_fallthru
      _
  $region6: #{_lambda_.2} parent=0 // loop_footer
    %s18 = sadd.s32 1, %s14
  $region7: #{_lambda_.2} parent=0 // loop_footer_branch
    %13 = sbr.rel target = $region3
  $region8: #{_lambda_.2} parent=0 // loop_exit
    _

</llo_original>
